<compile_context>
chip_gen: v7x
topology: tpu7x:2x2x1
jax: 0.10.0
libtpu: 0.0.40
codegen_flags: <defaults>
</compile_context>

<pallas_src>
import jax
import jax.numpy as jnp
import numpy as np
from jax.experimental import pallas as pl
from jax.experimental.pallas import tpu as pltpu


def _make_kernel(has_skip):
    """Kernel factory; `has_skip` is a static Python flag (arg list differs)."""

    def kernel(*refs):
        if has_skip:
            (x_ref, w1_ref, b1_ref, w2_ref, b2_ref, ws_ref, bs_ref,
             o_ref, a1_ref, a2_ref) = refs
        else:
            (x_ref, w1_ref, b1_ref, w2_ref, b2_ref,
             o_ref, a1_ref, a2_ref) = refs

        bt, lp1, cpi = x_ref.shape
        L = o_ref.shape[1]
        cpo = o_ref.shape[2]
        k1 = w1_ref.shape[0]
        k2 = w2_ref.shape[0]
        pad1 = (lp1 - L) // 2
        pad2 = (a2_ref.shape[1] - L) // 2

        def silu_bf16(v):
            # sigmoid via EUP exp + approximate reciprocal, all f32 math.
            e = jnp.exp(jnp.minimum(-v, 60.0))        # clamp avoids inf*0
            return (v * pl.reciprocal(1.0 + e, approx=True)).astype(jnp.bfloat16)

        # ---- conv1 activation: x is already zero-padded along L by the
        # wrapper; SiLU(0)==0 keeps the padded rows exactly zero.
        a1_ref[...] = silu_bf16(x_ref[...].astype(jnp.float32))

        def conv(a_ref, w_ref, b_ref, K, c_in):
            """Same-padded conv as K accumulating matmuls over tap slices."""
            acc = jnp.zeros((bt * L, cpo), jnp.float32)
            for k in range(K):                         # static tap loop
                tap = a_ref[:, pl.ds(k, L), :].reshape(bt * L, c_in)
                acc = acc + jnp.dot(tap, w_ref[k],
                                    preferred_element_type=jnp.float32)
            return acc + b_ref[...]

        h1 = conv(a1_ref, w1_ref, b1_ref, k1, cpi)     # (bt*L, cpo) f32

        # ---- conv2 activation: written once into a zero-edge-padded scratch.
        if pad2:
            zeros_edge = jnp.zeros((bt, pad2, cpo), jnp.bfloat16)
            a2_ref[:, pl.ds(0, pad2), :] = zeros_edge
            a2_ref[:, pl.ds(L + pad2, pad2), :] = zeros_edge
        a2_ref[:, pl.ds(pad2, L), :] = silu_bf16(h1).reshape(bt, L, cpo)

        h2 = conv(a2_ref, w2_ref, b2_ref, k2, cpo)     # (bt*L, cpo) f32

        # ---- skip path -----------------------------------------------------
        x_in = x_ref[:, pl.ds(pad1, L), :]
        if has_skip:
            skip = jnp.dot(x_in.reshape(bt * L, cpi), ws_ref[...],
                           preferred_element_type=jnp.float32) + bs_ref[...]
        else:
            # Identity skip: add the (bf16) input directly, no eye-matmul.
            skip = x_in.reshape(bt * L, cpo).astype(jnp.float32)

        o_ref[...] = (h2 + skip).reshape(bt, L, cpo).astype(o_ref.dtype)

    return kernel


def _round_up(x, m):
    return ((x + m - 1) // m) * m


def _vmem_budget():
    """Generation-aware (v7x 64 MiB vs v5e/v6e 128 MiB) VMEM sizing."""
    try:
        cap = int(pltpu.get_tpu_info().vmem_capacity_bytes)
    except Exception:
        cap = 128 << 20
    tile_budget = min(cap // 4, 24 << 20)
    vmem_limit = min(int(cap * 3 // 4), 100 << 20)
    return tile_budget, vmem_limit


def _pick_batch_tile(B, L, lp1, lp2, cpi, cpo, budget_bytes):
    """Largest divisor of B whose per-step working set fits the budget."""
    per_b = (3 * lp1 * cpi * 2        # x block (double-buffered) + a1 scratch, bf16
             + lp2 * cpo * 2          # a2 scratch, bf16
             + 2 * L * cpo * 2        # out block (double-buffered), bf16
             + 4 * L * cpo * 4)       # h1 / h2 / skip / sum f32 temporaries
    bt = int(max(1, min(B, budget_bytes // max(per_b, 1))))
    while B % bt != 0:
        bt -= 1
    return bt


def resnet_block_1d(x, params):
    """x: (B, Cin, L) float32, PyTorch NCL layout. Returns (B, Cout, L)."""
    B, Cin, L = x.shape
    w1, b1 = params["w1"], params["b1"]      # (Cout, Cin, K1), (Cout,)
    w2, b2 = params["w2"], params["b2"]      # (Cout, Cout, K2), (Cout,)
    Cout, _, K1 = w1.shape
    K2 = w2.shape[2]
    assert K1 % 2 == 1 and K2 % 2 == 1, "odd 'same' kernels assumed"
    pad1, pad2 = (K1 - 1) // 2, (K2 - 1) // 2
    has_skip = "wskip" in params
    if not has_skip:
        assert Cin == Cout, "identity skip requires Cin == Cout"

    LANE = 128
    cpi = _round_up(Cin, LANE)
    cpo = _round_up(Cout, LANE)
    lp1 = L + 2 * pad1
    lp2 = L + 2 * pad2

    # ---- layout plumbing (plain JAX; XLA fuses it into one pass over x) ----
    # channels-last, lane-padded channels, L zero-padded for conv1, bf16 HBM I/O.
    x_nlc = jnp.transpose(x, (0, 2, 1))
    x_p = jnp.pad(x_nlc, ((0, 0), (pad1, pad1), (0, cpi - Cin))
                  ).astype(jnp.bfloat16)                        # (B, lp1, cpi)

    def pack_conv_w(w, cin, cp_in):
        wk = jnp.transpose(w, (2, 1, 0)).astype(jnp.float32)    # (k, cin, Cout)
        wk = jnp.pad(wk, ((0, 0), (0, cp_in - cin), (0, cpo - Cout)))
        return wk.astype(jnp.bfloat16)                          # (k, cp_in, cpo)

    w1_p = pack_conv_w(w1, Cin, cpi)
    w2_p = pack_conv_w(w2, Cout, cpo)
    b1_p = jnp.pad(b1.astype(jnp.float32), (0, cpo - Cout))[None, :]
    b2_p = jnp.pad(b2.astype(jnp.float32), (0, cpo - Cout))[None, :]

    inputs = [x_p, w1_p, b1_p, w2_p, b2_p]
    weight_bytes = 2 * 2 * (int(w1_p.size) + int(w2_p.size))    # dbl-buffered bf16
    if has_skip:
        ws = params["wskip"][:, :, 0]                           # (Cout, Cin)
        bs = params["bskip"]
        ws_p = jnp.pad(jnp.transpose(ws, (1, 0)).astype(jnp.float32),
                       ((0, cpi - Cin), (0, cpo - Cout))).astype(jnp.bfloat16)
        bs_p = jnp.pad(bs.astype(jnp.float32), (0, cpo - Cout))[None, :]
        inputs += [ws_p, bs_p]
        weight_bytes += 2 * 2 * int(ws_p.size)

    tile_budget, vmem_limit = _vmem_budget()
    tile_budget = max(tile_budget - weight_bytes, 1 << 20)
    Bt = _pick_batch_tile(B, L, lp1, lp2, cpi, cpo, tile_budget)
    grid = (B // Bt,)

    in_specs = [
        pl.BlockSpec((Bt, lp1, cpi), lambda b: (b, 0, 0)),
        # Weights / biases: constant index maps -> fetched once and reused.
        # TODO(synk): pipeline_mode=pl.Buffered(1) here would also drop the
        # unused second weight buffer for very large channel counts (v7x VMEM).
        pl.BlockSpec((K1, cpi, cpo), lambda b: (0, 0, 0)),
        pl.BlockSpec((1, cpo), lambda b: (0, 0)),
        pl.BlockSpec((K2, cpo, cpo), lambda b: (0, 0, 0)),
        pl.BlockSpec((1, cpo), lambda b: (0, 0)),
    ]
    if has_skip:
        in_specs += [pl.BlockSpec((cpi, cpo), lambda b: (0, 0)),
                     pl.BlockSpec((1, cpo), lambda b: (0, 0))]

    out_p = pl.pallas_call(
        _make_kernel(has_skip),
        out_shape=jax.ShapeDtypeStruct((B, L, cpo), jnp.bfloat16),
        grid_spec=pltpu.PrefetchScalarGridSpec(
            num_scalar_prefetch=0,
            grid=grid,
            in_specs=in_specs,
            out_specs=pl.BlockSpec((Bt, L, cpo), lambda b: (b, 0, 0)),
            scratch_shapes=[pltpu.VMEM((Bt, lp1, cpi), jnp.bfloat16),
                            pltpu.VMEM((Bt, lp2, cpo), jnp.bfloat16)]),
        compiler_params=pltpu.CompilerParams(
            dimension_semantics=("parallel",),
            vmem_limit_bytes=vmem_limit),
    )(*inputs)

    out = out_p[:, :, :Cout]                                    # drop channel pad
    return jnp.transpose(out, (0, 2, 1)).astype(x.dtype)        # (B, Cout, L)


# ---------------------------- pure-JAX reference ----------------------------
def _conv1d_ref(x, w, b, padding):
    y = jax.lax.conv_general_dilated(
        x, w, window_strides=(1,), padding=[(padding, padding)],
        dimension_numbers=("NCH", "OIH", "NCH"))
    return y + b[None, :, None]


def resnet_block_1d_ref(x, params):
    silu = jax.nn.silu
    k1 = params["w1"].shape[2]
    h = _conv1d_ref(silu(x), params["w1"], params["b1"], (k1 - 1) // 2)
    h = _conv1d_ref(silu(h), params["w2"], params["b2"], 1)
    if "wskip" in params:
        skip = _conv1d_ref(x, params["wskip"], params["bskip"], 0)
    else:
        skip = x
    return h + skip


if __name__ == "__main__":
    root = jax.random.PRNGKey(0)
    key_a, key_b = jax.random.split(root)

    def make_params(key, cin, cout, k, with_skip):
        keys = jax.random.split(key, 7)
        s = 0.1
        p = {
            "w1": s * jax.random.normal(keys[0], (cout, cin, k), jnp.float32),
            "b1": s * jax.random.normal(keys[1], (cout,), jnp.float32),
            "w2": s * jax.random.normal(keys[2], (cout, cout, 3), jnp.float32),
            "b2": s * jax.random.normal(keys[3], (cout,), jnp.float32),
        }
        if with_skip:
            p["wskip"] = s * jax.random.normal(keys[4], (cout, cin, 1), jnp.float32)
            p["bskip"] = s * jax.random.normal(keys[5], (cout,), jnp.float32)
        return p, keys[6]

    # Case 1: Cin != Cout  -> 1x1 skip-conv path (B=2, Cin=4, Cout=8, L=16).
    p1, xk1 = make_params(key_a, 4, 8, 3, with_skip=True)
    x1 = jax.random.normal(xk1, (2, 4, 16), jnp.float32)
    out1 = jax.block_until_ready(resnet_block_1d(x1, p1))
    ref1 = jax.block_until_ready(resnet_block_1d_ref(x1, p1))
    np.testing.assert_allclose(np.asarray(out1), np.asarray(ref1),
                               rtol=3e-2, atol=1e-2)

    # Case 2: Cin == Cout -> identity skip (no eye-matmul in the kernel).
    p2, xk2 = make_params(key_b, 8, 8, 3, with_skip=False)
    x2 = jax.random.normal(xk2, (2, 8, 16), jnp.float32)
    out2 = jax.block_until_ready(resnet_block_1d(x2, p2))
    ref2 = jax.block_until_ready(resnet_block_1d_ref(x2, p2))
    np.testing.assert_allclose(np.asarray(out2), np.asarray(ref2),
                               rtol=3e-2, atol=1e-2)

    print("KERNEL_OK")
</pallas_src>

<mosaic_0001>
module attributes {stable_mosaic.version = 11 : i64} {
  func.func @kernel(%arg0: i32, %arg1: memref<2x18x128xbf16, #tpu.memory_space<vmem>>, %arg2: memref<3x128x128xbf16, #tpu.memory_space<vmem>>, %arg3: memref<1x128xf32, #tpu.memory_space<vmem>>, %arg4: memref<3x128x128xbf16, #tpu.memory_space<vmem>>, %arg5: memref<1x128xf32, #tpu.memory_space<vmem>>, %arg6: memref<128x128xbf16, #tpu.memory_space<vmem>>, %arg7: memref<1x128xf32, #tpu.memory_space<vmem>>, %arg8: memref<2x16x128xbf16, #tpu.memory_space<vmem>>, %arg9: memref<2x18x128xbf16, #tpu.memory_space<vmem>>, %arg10: memref<2x18x128xbf16, #tpu.memory_space<vmem>>) attributes {dimension_semantics = [#tpu.dimension_semantics<parallel>], iteration_bounds = array<i64: 1>, scalar_prefetch = 0 : i64, scratch_operands = 2 : i64, tpu.core_type = #tpu.core_type<tc>, window_params = [{transform_indices = @transform_0, window_bounds = array<i64: 2, 18, 128>}, {pipeline_mode = #tpu.pipeline_mode<synchronous>, transform_indices = @transform_1, window_bounds = array<i64: 3, 128, 128>}, {pipeline_mode = #tpu.pipeline_mode<synchronous>, transform_indices = @transform_2, window_bounds = array<i64: 1, 128>}, {pipeline_mode = #tpu.pipeline_mode<synchronous>, transform_indices = @transform_3, window_bounds = array<i64: 3, 128, 128>}, {pipeline_mode = #tpu.pipeline_mode<synchronous>, transform_indices = @transform_4, window_bounds = array<i64: 1, 128>}, {pipeline_mode = #tpu.pipeline_mode<synchronous>, transform_indices = @transform_5, window_bounds = array<i64: 128, 128>}, {pipeline_mode = #tpu.pipeline_mode<synchronous>, transform_indices = @transform_6, window_bounds = array<i64: 1, 128>}, {transform_indices = @transform_7, window_bounds = array<i64: 2, 16, 128>}]} {
    %c0 = arith.constant 0 : index
    %c0_0 = arith.constant 0 : index
    %c0_1 = arith.constant 0 : index
    %0 = vector.load %arg1[%c0, %c0_0, %c0_1] : memref<2x18x128xbf16, #tpu.memory_space<vmem>>, vector<2x18x128xbf16>
    %1 = arith.extf %0 : vector<2x18x128xbf16> to vector<2x18x128xf32>
    %cst = arith.constant 0.000000e+00 : f32
    %2 = vector.broadcast %cst : f32 to vector<2x18x128xf32>
    %3 = arith.subf %2, %1 : vector<2x18x128xf32>
    %cst_2 = arith.constant 6.000000e+01 : f32
    %4 = vector.broadcast %cst_2 : f32 to vector<2x18x128xf32>
    %5 = arith.minimumf %3, %4 : vector<2x18x128xf32>
    %6 = math.exp %5 : vector<2x18x128xf32>
    %cst_3 = arith.constant 1.000000e+00 : f32
    %7 = vector.broadcast %cst_3 : f32 to vector<2x18x128xf32>
    %8 = arith.addf %7, %6 : vector<2x18x128xf32>
    %9 = tpu.reciprocal %8 {approx = true} : vector<2x18x128xf32> -> vector<2x18x128xf32>
    %10 = arith.mulf %1, %9 : vector<2x18x128xf32>
    %11 = arith.truncf %10 : vector<2x18x128xf32> to vector<2x18x128xbf16>
    %c0_4 = arith.constant 0 : index
    %c0_5 = arith.constant 0 : index
    %c0_6 = arith.constant 0 : index
    %12 = vector.load %arg9[%c0_4, %c0_5, %c0_6] : memref<2x18x128xbf16, #tpu.memory_space<vmem>>, vector<2x18x128xbf16>
    tpu.vector_store %arg9[%c0_4, %c0_5, %c0_6], %11 {strides = array<i32>} : memref<2x18x128xbf16, #tpu.memory_space<vmem>>, vector<2x18x128xbf16>,
    %cst_7 = arith.constant 0.000000e+00 : f32
    %13 = vector.broadcast %cst_7 : f32 to vector<32x128xf32>
    %c0_8 = arith.constant 0 : index
    %c0_9 = arith.constant 0 : index
    %c0_10 = arith.constant 0 : index
    %14 = vector.load %arg9[%c0_8, %c0_9, %c0_10] : memref<2x18x128xbf16, #tpu.memory_space<vmem>>, vector<2x16x128xbf16>
    %15 = vector.shape_cast %14 : vector<2x16x128xbf16> to vector<32x128xbf16>
    %c0_11 = arith.constant 0 : index
    %c0_12 = arith.constant 0 : index
    %c0_13 = arith.constant 0 : index
    %16 = vector.load %arg2[%c0_11, %c0_12, %c0_13] : memref<3x128x128xbf16, #tpu.memory_space<vmem>>, vector<1x128x128xbf16>
    %17 = vector.shape_cast %16 : vector<1x128x128xbf16> to vector<128x128xbf16>
    %cst_14 = arith.constant dense<0.000000e+00> : vector<32x128xf32>
    %18 = tpu.matmul %15, %17, %cst_14 {dimension_numbers = #tpu.dot_dimension_numbers<[1], [0], [0], [1], [0, 0, 1, 1], [], []>} : vector<32x128xbf16>, vector<128x128xbf16>, vector<32x128xf32> -> vector<32x128xf32>
    %19 = arith.addf %13, %18 : vector<32x128xf32>
    %c0_15 = arith.constant 0 : index
    %c1 = arith.constant 1 : index
    %c0_16 = arith.constant 0 : index
    %20 = vector.load %arg9[%c0_15, %c1, %c0_16] : memref<2x18x128xbf16, #tpu.memory_space<vmem>>, vector<2x16x128xbf16>
    %21 = vector.shape_cast %20 : vector<2x16x128xbf16> to vector<32x128xbf16>
    %c1_17 = arith.constant 1 : index
    %c0_18 = arith.constant 0 : index
    %c0_19 = arith.constant 0 : index
    %22 = vector.load %arg2[%c1_17, %c0_18, %c0_19] : memref<3x128x128xbf16, #tpu.memory_space<vmem>>, vector<1x128x128xbf16>
    %23 = vector.shape_cast %22 : vector<1x128x128xbf16> to vector<128x128xbf16>
    %cst_20 = arith.constant dense<0.000000e+00> : vector<32x128xf32>
    %24 = tpu.matmul %21, %23, %cst_20 {dimension_numbers = #tpu.dot_dimension_numbers<[1], [0], [0], [1], [0, 0, 1, 1], [], []>} : vector<32x128xbf16>, vector<128x128xbf16>, vector<32x128xf32> -> vector<32x128xf32>
    %25 = arith.addf %19, %24 : vector<32x128xf32>
    %c0_21 = arith.constant 0 : index
    %c2 = arith.constant 2 : index
    %c0_22 = arith.constant 0 : index
    %26 = vector.load %arg9[%c0_21, %c2, %c0_22] : memref<2x18x128xbf16, #tpu.memory_space<vmem>>, vector<2x16x128xbf16>
    %27 = vector.shape_cast %26 : vector<2x16x128xbf16> to vector<32x128xbf16>
    %c2_23 = arith.constant 2 : index
    %c0_24 = arith.constant 0 : index
    %c0_25 = arith.constant 0 : index
    %28 = vector.load %arg2[%c2_23, %c0_24, %c0_25] : memref<3x128x128xbf16, #tpu.memory_space<vmem>>, vector<1x128x128xbf16>
    %29 = vector.shape_cast %28 : vector<1x128x128xbf16> to vector<128x128xbf16>
    %cst_26 = arith.constant dense<0.000000e+00> : vector<32x128xf32>
    %30 = tpu.matmul %27, %29, %cst_26 {dimension_numbers = #tpu.dot_dimension_numbers<[1], [0], [0], [1], [0, 0, 1, 1], [], []>} : vector<32x128xbf16>, vector<128x128xbf16>, vector<32x128xf32> -> vector<32x128xf32>
    %31 = arith.addf %25, %30 : vector<32x128xf32>
    %c0_27 = arith.constant 0 : index
    %c0_28 = arith.constant 0 : index
    %32 = vector.load %arg3[%c0_27, %c0_28] : memref<1x128xf32, #tpu.memory_space<vmem>>, vector<1x128xf32>
    %33 = vector.broadcast %32 : vector<1x128xf32> to vector<32x128xf32>
    %34 = arith.addf %31, %33 : vector<32x128xf32>
    %cst_29 = arith.constant 0.000000e+00 : bf16
    %35 = vector.broadcast %cst_29 : bf16 to vector<2x1x128xbf16>
    %c0_30 = arith.constant 0 : index
    %c0_31 = arith.constant 0 : index
    %c0_32 = arith.constant 0 : index
    %36 = vector.load %arg10[%c0_30, %c0_31, %c0_32] : memref<2x18x128xbf16, #tpu.memory_space<vmem>>, vector<2x1x128xbf16>
    tpu.vector_store %arg10[%c0_30, %c0_31, %c0_32], %35 {strides = array<i32>} : memref<2x18x128xbf16, #tpu.memory_space<vmem>>, vector<2x1x128xbf16>,
    %c0_33 = arith.constant 0 : index
    %c17 = arith.constant 17 : index
    %c0_34 = arith.constant 0 : index
    %37 = vector.load %arg10[%c0_33, %c17, %c0_34] : memref<2x18x128xbf16, #tpu.memory_space<vmem>>, vector<2x1x128xbf16>
    tpu.vector_store %arg10[%c0_33, %c17, %c0_34], %35 {strides = array<i32>} : memref<2x18x128xbf16, #tpu.memory_space<vmem>>, vector<2x1x128xbf16>,
    %cst_35 = arith.constant 0.000000e+00 : f32
    %38 = vector.broadcast %cst_35 : f32 to vector<32x128xf32>
    %39 = arith.subf %38, %34 : vector<32x128xf32>
    %cst_36 = arith.constant 6.000000e+01 : f32
    %40 = vector.broadcast %cst_36 : f32 to vector<32x128xf32>
    %41 = arith.minimumf %39, %40 : vector<32x128xf32>
    %42 = math.exp %41 : vector<32x128xf32>
    %cst_37 = arith.constant 1.000000e+00 : f32
    %43 = vector.broadcast %cst_37 : f32 to vector<32x128xf32>
    %44 = arith.addf %43, %42 : vector<32x128xf32>
    %45 = tpu.reciprocal %44 {approx = true} : vector<32x128xf32> -> vector<32x128xf32>
    %46 = arith.mulf %34, %45 : vector<32x128xf32>
    %47 = arith.truncf %46 : vector<32x128xf32> to vector<32x128xbf16>
    %48 = vector.shape_cast %47 : vector<32x128xbf16> to vector<2x16x128xbf16>
    %c0_38 = arith.constant 0 : index
    %c1_39 = arith.constant 1 : index
    %c0_40 = arith.constant 0 : index
    %49 = vector.load %arg10[%c0_38, %c1_39, %c0_40] : memref<2x18x128xbf16, #tpu.memory_space<vmem>>, vector<2x16x128xbf16>
    tpu.vector_store %arg10[%c0_38, %c1_39, %c0_40], %48 {strides = array<i32>} : memref<2x18x128xbf16, #tpu.memory_space<vmem>>, vector<2x16x128xbf16>,
    %cst_41 = arith.constant 0.000000e+00 : f32
    %50 = vector.broadcast %cst_41 : f32 to vector<32x128xf32>
    %c0_42 = arith.constant 0 : index
    %c0_43 = arith.constant 0 : index
    %c0_44 = arith.constant 0 : index
    %51 = vector.load %arg10[%c0_42, %c0_43, %c0_44] : memref<2x18x128xbf16, #tpu.memory_space<vmem>>, vector<2x16x128xbf16>
    %52 = vector.shape_cast %51 : vector<2x16x128xbf16> to vector<32x128xbf16>
    %c0_45 = arith.constant 0 : index
    %c0_46 = arith.constant 0 : index
    %c0_47 = arith.constant 0 : index
    %53 = vector.load %arg4[%c0_45, %c0_46, %c0_47] : memref<3x128x128xbf16, #tpu.memory_space<vmem>>, vector<1x128x128xbf16>
    %54 = vector.shape_cast %53 : vector<1x128x128xbf16> to vector<128x128xbf16>
    %cst_48 = arith.constant dense<0.000000e+00> : vector<32x128xf32>
    %55 = tpu.matmul %52, %54, %cst_48 {dimension_numbers = #tpu.dot_dimension_numbers<[1], [0], [0], [1], [0, 0, 1, 1], [], []>} : vector<32x128xbf16>, vector<128x128xbf16>, vector<32x128xf32> -> vector<32x128xf32>
    %56 = arith.addf %50, %55 : vector<32x128xf32>
    %c0_49 = arith.constant 0 : index
    %c1_50 = arith.constant 1 : index
    %c0_51 = arith.constant 0 : index
    %57 = vector.load %arg10[%c0_49, %c1_50, %c0_51] : memref<2x18x128xbf16, #tpu.memory_space<vmem>>, vector<2x16x128xbf16>
    %58 = vector.shape_cast %57 : vector<2x16x128xbf16> to vector<32x128xbf16>
    %c1_52 = arith.constant 1 : index
    %c0_53 = arith.constant 0 : index
    %c0_54 = arith.constant 0 : index
    %59 = vector.load %arg4[%c1_52, %c0_53, %c0_54] : memref<3x128x128xbf16, #tpu.memory_space<vmem>>, vector<1x128x128xbf16>
    %60 = vector.shape_cast %59 : vector<1x128x128xbf16> to vector<128x128xbf16>
    %cst_55 = arith.constant dense<0.000000e+00> : vector<32x128xf32>
    %61 = tpu.matmul %58, %60, %cst_55 {dimension_numbers = #tpu.dot_dimension_numbers<[1], [0], [0], [1], [0, 0, 1, 1], [], []>} : vector<32x128xbf16>, vector<128x128xbf16>, vector<32x128xf32> -> vector<32x128xf32>
    %62 = arith.addf %56, %61 : vector<32x128xf32>
    %c0_56 = arith.constant 0 : index
    %c2_57 = arith.constant 2 : index
    %c0_58 = arith.constant 0 : index
    %63 = vector.load %arg10[%c0_56, %c2_57, %c0_58] : memref<2x18x128xbf16, #tpu.memory_space<vmem>>, vector<2x16x128xbf16>
    %64 = vector.shape_cast %63 : vector<2x16x128xbf16> to vector<32x128xbf16>
    %c2_59 = arith.constant 2 : index
    %c0_60 = arith.constant 0 : index
    %c0_61 = arith.constant 0 : index
    %65 = vector.load %arg4[%c2_59, %c0_60, %c0_61] : memref<3x128x128xbf16, #tpu.memory_space<vmem>>, vector<1x128x128xbf16>
    %66 = vector.shape_cast %65 : vector<1x128x128xbf16> to vector<128x128xbf16>
    %cst_62 = arith.constant dense<0.000000e+00> : vector<32x128xf32>
    %67 = tpu.matmul %64, %66, %cst_62 {dimension_numbers = #tpu.dot_dimension_numbers<[1], [0], [0], [1], [0, 0, 1, 1], [], []>} : vector<32x128xbf16>, vector<128x128xbf16>, vector<32x128xf32> -> vector<32x128xf32>
    %68 = arith.addf %62, %67 : vector<32x128xf32>
    %c0_63 = arith.constant 0 : index
    %c0_64 = arith.constant 0 : index
    %69 = vector.load %arg5[%c0_63, %c0_64] : memref<1x128xf32, #tpu.memory_space<vmem>>, vector<1x128xf32>
    %70 = vector.broadcast %69 : vector<1x128xf32> to vector<32x128xf32>
    %71 = arith.addf %68, %70 : vector<32x128xf32>
    %c0_65 = arith.constant 0 : index
    %c1_66 = arith.constant 1 : index
    %c0_67 = arith.constant 0 : index
    %72 = vector.load %arg1[%c0_65, %c1_66, %c0_67] : memref<2x18x128xbf16, #tpu.memory_space<vmem>>, vector<2x16x128xbf16>
    %73 = vector.shape_cast %72 : vector<2x16x128xbf16> to vector<32x128xbf16>
    %c0_68 = arith.constant 0 : index
    %c0_69 = arith.constant 0 : index
    %74 = vector.load %arg6[%c0_68, %c0_69] : memref<128x128xbf16, #tpu.memory_space<vmem>>, vector<128x128xbf16>
    %cst_70 = arith.constant dense<0.000000e+00> : vector<32x128xf32>
    %75 = tpu.matmul %73, %74, %cst_70 {dimension_numbers = #tpu.dot_dimension_numbers<[1], [0], [0], [1], [0, 0, 1, 1], [], []>} : vector<32x128xbf16>, vector<128x128xbf16>, vector<32x128xf32> -> vector<32x128xf32>
    %c0_71 = arith.constant 0 : index
    %c0_72 = arith.constant 0 : index
    %76 = vector.load %arg7[%c0_71, %c0_72] : memref<1x128xf32, #tpu.memory_space<vmem>>, vector<1x128xf32>
    %77 = vector.broadcast %76 : vector<1x128xf32> to vector<32x128xf32>
    %78 = arith.addf %75, %77 : vector<32x128xf32>
    %79 = arith.addf %71, %78 : vector<32x128xf32>
    %80 = vector.shape_cast %79 : vector<32x128xf32> to vector<2x16x128xf32>
    %81 = arith.truncf %80 : vector<2x16x128xf32> to vector<2x16x128xbf16>
    %c0_73 = arith.constant 0 : index
    %c0_74 = arith.constant 0 : index
    %c0_75 = arith.constant 0 : index
    %82 = vector.load %arg8[%c0_73, %c0_74, %c0_75] : memref<2x16x128xbf16, #tpu.memory_space<vmem>>, vector<2x16x128xbf16>
    tpu.vector_store %arg8[%c0_73, %c0_74, %c0_75], %81 {strides = array<i32>} : memref<2x16x128xbf16, #tpu.memory_space<vmem>>, vector<2x16x128xbf16>,
    return
  }
  func.func @transform_0(%arg0: i32) -> (i32, i32, i32) {
    %c0_i32 = arith.constant 0 : i32
    %c0_i32_0 = arith.constant 0 : i32
    %c0_i32_1 = arith.constant 0 : i32
    return %arg0, %c0_i32, %c0_i32_0 : i32, i32, i32
  }
  func.func @transform_1(%arg0: i32) -> (i32, i32, i32) {
    %c0_i32 = arith.constant 0 : i32
    %c0_i32_0 = arith.constant 0 : i32
    %c0_i32_1 = arith.constant 0 : i32
    %c0_i32_2 = arith.constant 0 : i32
    return %c0_i32, %c0_i32_0, %c0_i32_1 : i32, i32, i32
  }
  func.func @transform_2(%arg0: i32) -> (i32, i32) {
    %c0_i32 = arith.constant 0 : i32
    %c0_i32_0 = arith.constant 0 : i32
    %c0_i32_1 = arith.constant 0 : i32
    return %c0_i32, %c0_i32_0 : i32, i32
  }
  func.func @transform_3(%arg0: i32) -> (i32, i32, i32) {
    %c0_i32 = arith.constant 0 : i32
    %c0_i32_0 = arith.constant 0 : i32
    %c0_i32_1 = arith.constant 0 : i32
    %c0_i32_2 = arith.constant 0 : i32
    return %c0_i32, %c0_i32_0, %c0_i32_1 : i32, i32, i32
  }
  func.func @transform_4(%arg0: i32) -> (i32, i32) {
    %c0_i32 = arith.constant 0 : i32
    %c0_i32_0 = arith.constant 0 : i32
    %c0_i32_1 = arith.constant 0 : i32
    return %c0_i32, %c0_i32_0 : i32, i32
  }
  func.func @transform_5(%arg0: i32) -> (i32, i32) {
    %c0_i32 = arith.constant 0 : i32
    %c0_i32_0 = arith.constant 0 : i32
    %c0_i32_1 = arith.constant 0 : i32
    return %c0_i32, %c0_i32_0 : i32, i32
  }
  func.func @transform_6(%arg0: i32) -> (i32, i32) {
    %c0_i32 = arith.constant 0 : i32
    %c0_i32_0 = arith.constant 0 : i32
    %c0_i32_1 = arith.constant 0 : i32
    return %c0_i32, %c0_i32_0 : i32, i32
  }
  func.func @transform_7(%arg0: i32) -> (i32, i32, i32) {
    %c0_i32 = arith.constant 0 : i32
    %c0_i32_0 = arith.constant 0 : i32
    %c0_i32_1 = arith.constant 0 : i32
    return %arg0, %c0_i32, %c0_i32_0 : i32, i32, i32
  }
}

</mosaic_0001>

<llo_original>
// kernel: tpu_custom_call.1
$region0: #{tpu_custom_call.1}
  #allocation0 [shape = 'u32[]', space=smem, size = 0x4, offset = 0x4, fixed_abs, tag = 'smem constant byte address 0x4 - core index']
  #allocation1 [shape = 'u32[144,128]{1,0:T(1,128)}', space=vmem, size = 0x12000, scoped, tag = 'internal scratch']
  #allocation2 [shape = 'bf16[2,18,128]{2,1,0:T(8,128)(2,1)}', space=vmem, size = 0x3000, scoped, tag = 'scratch operand']
  #allocation3 [shape = 'bf16[2,18,128]{2,1,0:T(8,128)(2,1)}', space=vmem, size = 0x3000, scoped, tag = 'scratch operand']
  %s0 = inlined_call_operand.hbm [shape: bf16[2,18,128], index: 0, kind: input, shape index: {}]
  %s1 = inlined_call_operand.hbm [shape: bf16[3,128,128], index: 1, kind: input, shape index: {}]
  %s2 = inlined_call_operand.hbm [shape: f32[1,128], index: 2, kind: input, shape index: {}]
  %s3 = inlined_call_operand.hbm [shape: bf16[3,128,128], index: 3, kind: input, shape index: {}]
  %s4 = inlined_call_operand.hbm [shape: f32[1,128], index: 4, kind: input, shape index: {}]
  %s5 = inlined_call_operand.hbm [shape: bf16[128,128], index: 5, kind: input, shape index: {}]
  %s6 = inlined_call_operand.hbm [shape: f32[1,128], index: 6, kind: input, shape index: {}]
  %s7 = inlined_call_operand.hbm [shape: bf16[2,16,128], index: 7, kind: output, shape index: {}]
  %s8 = sld [smem:[#allocation0]]
  $region66: #{tpu_custom_call.1} parent=0
    _
  %s10 = ssub.s32 1, %s8
  %s11 = scalar_select 0, %s10, %s8
  $region1: #{tpu_custom_call.1} parent=0
    #allocation4 [shape = 'u8[12288]{0}', space=vmem, size = 0x3000, scoped, tag = 'input window, operand 0, single buffered']
    #allocation5 [shape = 's32[1]{0}', space=sflag, size = 0x4, scoped, tag = 'scoped memory for tpu_custom_call.1']
    #allocation6 [shape = 's32[1]{0}', space=sflag, size = 0x4, scoped, tag = 'scoped memory for tpu_custom_call.1']
    #allocation7 [shape = 'u8[98304]{0}', space=vmem, size = 0x18000, scoped, tag = 'input window, operand 1, single buffered']
    #allocation8 [shape = 's32[1]{0}', space=sflag, size = 0x4, scoped, tag = 'scoped memory for tpu_custom_call.1']
    #allocation9 [shape = 'u8[512]{0}', space=vmem, size = 0x400, scoped, tag = 'input window, operand 2, single buffered']
    #allocation10 [shape = 'u8[98304]{0}', space=vmem, size = 0x18000, scoped, tag = 'input window, operand 3, single buffered']
    #allocation11 [shape = 's32[1]{0}', space=sflag, size = 0x4, scoped, tag = 'scoped memory for tpu_custom_call.1']
    #allocation12 [shape = 'u8[512]{0}', space=vmem, size = 0x400, scoped, tag = 'input window, operand 4, single buffered']
    #allocation13 [shape = 'u8[32768]{0}', space=vmem, size = 0x8000, scoped, tag = 'input window, operand 5, single buffered']
    #allocation14 [shape = 's32[1]{0}', space=sflag, size = 0x4, scoped, tag = 'scoped memory for tpu_custom_call.1']
    #allocation15 [shape = 'u8[512]{0}', space=vmem, size = 0x400, scoped, tag = 'input window, operand 6, single buffered']
    #allocation16 [shape = 'u8[8192]{0}', space=vmem, size = 0x2000, scoped, tag = 'output window, operand 0, single buffered']
    %12 = vsyncpa [#allocation5], 0
    %13 = vsyncpa [#allocation8], 0
    %14 = vsyncpa [#allocation11], 0
    %15 = vsyncpa [#allocation14], 0
    %16 = vsyncpa [#allocation6], 0
    // Predicated region
    $region2: #{tpu_custom_call.1} parent=1 // pred_check
      _
    $region3: #{tpu_custom_call.1} parent=1 // pred_check_branch
      %18 = sbr.rel (0) target = $region5
    $region4: #{tpu_custom_call.1} parent=1 // pred_region
      %s20 = ssub.s32 384, 384
      %21 = vsyncadd [#allocation5], %s20
      %s22 = sshll.u32 [#allocation4], 4
      %s23 = int_to_ptr.vmem [resolvable:$true] %s22
      %28 = dma.hbm_to_vmem [thread:$0]  %s0, 384, %s23, [#allocation5], 64, 64, 4
    $region5: #{tpu_custom_call.1} parent=1 // pred_fallthru
      _
    // Predicated region
    $region6: #{tpu_custom_call.1} parent=1 // pred_check
      _
    $region7: #{tpu_custom_call.1} parent=1 // pred_check_branch
      %30 = sbr.rel (0) target = $region9
    $region8: #{tpu_custom_call.1} parent=1 // pred_region
      %s32 = ssub.s32 3072, 3072
      %33 = vsyncadd [#allocation8], %s32
      %s34 = sshll.u32 [#allocation7], 4
      %s35 = int_to_ptr.vmem [resolvable:$true] %s34
      %40 = dma.hbm_to_vmem [thread:$0]  %s1, 3072, %s35, [#allocation8], 64, 64, 4
    $region9: #{tpu_custom_call.1} parent=1 // pred_fallthru
      _
    // Predicated region
    $region10: #{tpu_custom_call.1} parent=1 // pred_check
      _
    $region11: #{tpu_custom_call.1} parent=1 // pred_check_branch
      %42 = sbr.rel (0) target = $region13
    $region12: #{tpu_custom_call.1} parent=1 // pred_region
      %s44 = ssub.s32 16, 16
      %45 = vsyncadd [#allocation8], %s44
      %s47 = sshll.u32 [#allocation9], 4
      %s48 = int_to_ptr.vmem [resolvable:$true] %s47
      %50 = dma.hbm_to_vmem [thread:$0]  %s2, 16, %s48, [#allocation8]
    $region13: #{tpu_custom_call.1} parent=1 // pred_fallthru
      _
    // Predicated region
    $region14: #{tpu_custom_call.1} parent=1 // pred_check
      _
    $region15: #{tpu_custom_call.1} parent=1 // pred_check_branch
      %52 = sbr.rel (0) target = $region17
    $region16: #{tpu_custom_call.1} parent=1 // pred_region
      %s54 = ssub.s32 3072, 3072
      %55 = vsyncadd [#allocation11], %s54
      %s56 = sshll.u32 [#allocation10], 4
      %s57 = int_to_ptr.vmem [resolvable:$true] %s56
      %62 = dma.hbm_to_vmem [thread:$0]  %s3, 3072, %s57, [#allocation11], 64, 64, 4
    $region17: #{tpu_custom_call.1} parent=1 // pred_fallthru
      _
    // Predicated region
    $region18: #{tpu_custom_call.1} parent=1 // pred_check
      _
    $region19: #{tpu_custom_call.1} parent=1 // pred_check_branch
      %64 = sbr.rel (0) target = $region21
    $region20: #{tpu_custom_call.1} parent=1 // pred_region
      %s66 = ssub.s32 16, 16
      %67 = vsyncadd [#allocation11], %s66
      %s69 = sshll.u32 [#allocation12], 4
      %s70 = int_to_ptr.vmem [resolvable:$true] %s69
      %72 = dma.hbm_to_vmem [thread:$0]  %s4, 16, %s70, [#allocation11]
    $region21: #{tpu_custom_call.1} parent=1 // pred_fallthru
      _
    // Predicated region
    $region22: #{tpu_custom_call.1} parent=1 // pred_check
      _
    $region23: #{tpu_custom_call.1} parent=1 // pred_check_branch
      %74 = sbr.rel (0) target = $region25
    $region24: #{tpu_custom_call.1} parent=1 // pred_region
      %s76 = ssub.s32 1024, 1024
      %77 = vsyncadd [#allocation14], %s76
      %s78 = sshll.u32 [#allocation13], 4
      %s79 = int_to_ptr.vmem [resolvable:$true] %s78
      %84 = dma.hbm_to_vmem [thread:$0]  %s5, 1024, %s79, [#allocation14], 64, 64, 4
    $region25: #{tpu_custom_call.1} parent=1 // pred_fallthru
      _
    // Predicated region
    $region26: #{tpu_custom_call.1} parent=1 // pred_check
      _
    $region27: #{tpu_custom_call.1} parent=1 // pred_check_branch
      %86 = sbr.rel (0) target = $region29
    $region28: #{tpu_custom_call.1} parent=1 // pred_region
      %s88 = ssub.s32 16, 16
      %89 = vsyncadd [#allocation14], %s88
      %s91 = sshll.u32 [#allocation15], 4
      %s92 = int_to_ptr.vmem [resolvable:$true] %s91
      %94 = dma.hbm_to_vmem [thread:$0]  %s6, 16, %s92, [#allocation14]
    $region29: #{tpu_custom_call.1} parent=1 // pred_fallthru
      _
    // Predicated region
    $region30: #{tpu_custom_call.1} parent=1 // pred_check
      _
    $region31: #{tpu_custom_call.1} parent=1 // pred_check_branch
      %96 = sbr.rel (0) target = $region33
    $region32: #{tpu_custom_call.1} parent=1 // pred_region
      %97 = dma.done [#allocation5], 384
    $region33: #{tpu_custom_call.1} parent=1 // pred_fallthru
      _
    // Predicated region
    $region34: #{tpu_custom_call.1} parent=1 // pred_check
      _
    $region35: #{tpu_custom_call.1} parent=1 // pred_check_branch
      %99 = sbr.rel (0) target = $region37
    $region36: #{tpu_custom_call.1} parent=1 // pred_region
      %100 = dma.done [#allocation8], 3072
    $region37: #{tpu_custom_call.1} parent=1 // pred_fallthru
      _
    // Predicated region
    $region38: #{tpu_custom_call.1} parent=1 // pred_check
      _
    $region39: #{tpu_custom_call.1} parent=1 // pred_check_branch
      %102 = sbr.rel (0) target = $region41
    $region40: #{tpu_custom_call.1} parent=1 // pred_region
      %103 = dma.done [#allocation8], 16
    $region41: #{tpu_custom_call.1} parent=1 // pred_fallthru
      _
    // Predicated region
    $region42: #{tpu_custom_call.1} parent=1 // pred_check
      _
    $region43: #{tpu_custom_call.1} parent=1 // pred_check_branch
      %105 = sbr.rel (0) target = $region45
    $region44: #{tpu_custom_call.1} parent=1 // pred_region
      %106 = dma.done [#allocation11], 3072
    $region45: #{tpu_custom_call.1} parent=1 // pred_fallthru
      _
    // Predicated region
    $region46: #{tpu_custom_call.1} parent=1 // pred_check
      _
    $region47: #{tpu_custom_call.1} parent=1 // pred_check_branch
      %108 = sbr.rel (0) target = $region49
    $region48: #{tpu_custom_call.1} parent=1 // pred_region
      %109 = dma.done [#allocation11], 16
    $region49: #{tpu_custom_call.1} parent=1 // pred_fallthru
      _
    // Predicated region
    $region50: #{tpu_custom_call.1} parent=1 // pred_check
      _
    $region51: #{tpu_custom_call.1} parent=1 // pred_check_branch
      %111 = sbr.rel (0) target = $region53
    $region52: #{tpu_custom_call.1} parent=1 // pred_region
      %112 = dma.done [#allocation14], 1024
    $region53: #{tpu_custom_call.1} parent=1 // pred_fallthru
      _
    // Predicated region
    $region54: #{tpu_custom_call.1} parent=1 // pred_check
      _
    $region55: #{tpu_custom_call.1} parent=1 // pred_check_branch
      %114 = sbr.rel (0) target = $region57
    $region56: #{tpu_custom_call.1} parent=1 // pred_region
      %115 = dma.done [#allocation14], 16
    $region57: #{tpu_custom_call.1} parent=1 // pred_fallthru
      _
    %v117 = vld [vmem:[#allocation4] sm:$0xf]
    %v118 = vld [vmem:[#allocation4 + $0x4] sm:$0xf]
    %v119 = vld [vmem:[#allocation4 + $0x8] sm:$0x1]
    %v120 = vld [vmem:[#allocation4 + $0xc] sm:$0xf]
    %v121 = vld [vmem:[#allocation4 + $0x10] sm:$0xf]
    %v122 = vld [vmem:[#allocation4 + $0x14] sm:$0x1]
    %v123 = vunpack.c.l.bf16 %v117
    %v124 = vunpack.c.l.bf16 %v118
    %v125 = vunpack.c.l.bf16 %v119
    %v126 = vunpack.c.l.bf16 %v120
    %v127 = vunpack.c.l.bf16 %v121
    %v128 = vunpack.c.l.bf16 %v122
    %v129 = vsub.f32 0.0, %v123
    %v130 = vsub.f32 0.0, %v124
    %v131 = vsub.f32 0.0, %v125
    %v132 = vsub.f32 0.0, %v126
    %v133 = vsub.f32 0.0, %v127
    %v134 = vsub.f32 0.0, %v128
    %v135 = vmin.f32 %v129, 60.0
    %v136 = vmin.f32 %v130, 60.0
    %v137 = vmin.f32 %v131, 60.0
    %v138 = vmin.f32 %v132, 60.0
    %v139 = vmin.f32 %v133, 60.0
    %v140 = vmin.f32 %v134, 60.0
    %v141 = vmul.f32 %v135, 1.442695
    %v142 = vpow.pop %v141
    %v143 = vmul.f32 %v136, 1.442695
    %v144 = vpow.pop %v143
    %v145 = vmul.f32 %v137, 1.442695
    %v146 = vpow.pop %v145
    %v147 = vmul.f32 %v138, 1.442695
    %v148 = vpow.pop %v147
    %v149 = vmul.f32 %v139, 1.442695
    %v150 = vpow.pop %v149
    %v151 = vmul.f32 %v140, 1.442695
    %v152 = vpow.pop %v151
    %v153 = vadd.f32 %v142, 1.0
    %v154 = vadd.f32 %v144, 1.0
    %v155 = vadd.f32 %v146, 1.0
    %v156 = vadd.f32 %v148, 1.0
    %v157 = vadd.f32 %v150, 1.0
    %v158 = vadd.f32 %v152, 1.0
    %v159 = vrcp.pop %v153
    %v160 = vrcp.pop %v154
    %v161 = vrcp.pop %v155
    %v162 = vrcp.pop %v156
    %v163 = vrcp.pop %v157
    %v164 = vrcp.pop %v158
    %v165 = vmul.f32 %v123, %v159
    %v166 = vmul.f32 %v124, %v160
    %v167 = vmul.f32 %v125, %v161
    %v168 = vmul.f32 %v126, %v162
    %v169 = vmul.f32 %v127, %v163
    %v170 = vmul.f32 %v128, %v164
    %v171 = vpack.c.bf16 %v166, %v165
    %v172 = vpack.c.bf16 %v167, %v167
    %v173 = vpack.c.bf16 %v169, %v168
    %v174 = vpack.c.bf16 %v170, %v170
    %v179 = vunpack.c.l.b16 %v171
    %v180 = vunpack.c.h.b16 %v171
    %v181 = vunpack.c.l.b16 %v172
    %v182 = vunpack.c.l.b16 %v173
    %v183 = vunpack.c.h.b16 %v173
    %v184 = vunpack.c.l.b16 %v174
    %v185 = vpack.c.b16 %v179, %v179
    %v186 = vpack.c.b16 %v180, %v180
    %v187 = vpack.c.b16 %v181, %v181
    %v188 = vpack.c.b16 %v182, %v182
    %v189 = vpack.c.b16 %v183, %v183
    %v190 = vpack.c.b16 %v184, %v184
    %197 = vst [vmem:[#allocation2] sm:$0xf] %v185
    %198 = vst [vmem:[#allocation2 + $0x4] sm:$0xf] %v186
    %199 = vst [vmem:[#allocation2 + $0x8] sm:$0x1] %v187
    %200 = vst [vmem:[#allocation2 + $0xc] sm:$0xf] %v188
    %201 = vst [vmem:[#allocation2 + $0x10] sm:$0xf] %v189
    %202 = vst [vmem:[#allocation2 + $0x14] sm:$0x1] %v190
    %v203 = vld [vmem:[#allocation2] sm:$0xf]
    %v204 = vld [vmem:[#allocation2 + $0x4] sm:$0xf]
    %v205 = vld [vmem:[#allocation2 + $0xc] sm:$0xf]
    %v206 = vld [vmem:[#allocation2 + $0x10] sm:$0xf]
    %v207 = vld [vmem:[#allocation7] sm:$0xf]
    %v208 = vld [vmem:[#allocation7 + $0x4] sm:$0xf]
    %v209 = vld [vmem:[#allocation7 + $0x8] sm:$0xf]
    %v210 = vld [vmem:[#allocation7 + $0xc] sm:$0xf]
    %v211 = vld [vmem:[#allocation7 + $0x10] sm:$0xf]
    %v212 = vld [vmem:[#allocation7 + $0x14] sm:$0xf]
    %v213 = vld [vmem:[#allocation7 + $0x18] sm:$0xf]
    %v214 = vld [vmem:[#allocation7 + $0x1c] sm:$0xf]
    %v215 = vld [vmem:[#allocation7 + $0x20] sm:$0xf]
    %v216 = vld [vmem:[#allocation7 + $0x24] sm:$0xf]
    %v217 = vld [vmem:[#allocation7 + $0x28] sm:$0xf]
    %v218 = vld [vmem:[#allocation7 + $0x2c] sm:$0xf]
    %v219 = vld [vmem:[#allocation7 + $0x30] sm:$0xf]
    %v220 = vld [vmem:[#allocation7 + $0x34] sm:$0xf]
    %v221 = vld [vmem:[#allocation7 + $0x38] sm:$0xf]
    %v222 = vld [vmem:[#allocation7 + $0x3c] sm:$0xf]
    %v223 = vld [vmem:[#allocation2 + $0x8] sm:$0x1]
    %v224 = vld [vmem:[#allocation2 + $0x14] sm:$0x1]
    %vm225 = vsmask.f32 3328
    %vm226 = vsmask.f32 7440
    %vm227 = vmor %vm225, %vm226
    %v229 = vshrl.u32 %v203, 16
    %v231 = vrot.slane %v229, 4
    %v232 = vshll.u32 %v203, 16
    %v234 = vrot.slane %v232, 5
    %v235 = vor.u32 %v231, %v234
    %v236 = vrot.slane %v235, 4
    %v238 = vshll.u32 %v204, 16
    %v240 = vrot.slane %v238, 5
    %v241 = vsel %vm227, %v236, %v240
    %v242 = vshrl.u32 %v204, 16
    %v244 = vrot.slane %v242, 4
    %v245 = vor.u32 %v244, %v240
    %v246 = vrot.slane %v245, 4
    %v248 = vshll.u32 %v223, 16
    %v250 = vrot.slane %v248, 5
    %v251 = vsel %vm227, %v246, %v250
    %v253 = vshrl.u32 %v205, 16
    %v255 = vrot.slane %v253, 4
    %v256 = vshll.u32 %v205, 16
    %v258 = vrot.slane %v256, 5
    %v259 = vor.u32 %v255, %v258
    %v260 = vrot.slane %v259, 4
    %v262 = vshll.u32 %v206, 16
    %v264 = vrot.slane %v262, 5
    %v265 = vsel %vm227, %v260, %v264
    %v266 = vshrl.u32 %v206, 16
    %v268 = vrot.slane %v266, 4
    %v269 = vor.u32 %v268, %v264
    %v270 = vrot.slane %v269, 4
    %v272 = vshll.u32 %v224, 16
    %v274 = vrot.slane %v272, 5
    %v275 = vsel %vm227, %v270, %v274
    %s276 = scalar_lea.vmem [#allocation7], 64
    %v277 = vld [vmem:[%s276] sm:$0xf]
    %v278 = vld [vmem:[%s276 + $0x4] sm:$0xf]
    %v279 = vld [vmem:[%s276 + $0x8] sm:$0xf]
    %v280 = vld [vmem:[%s276 + $0xc] sm:$0xf]
    %v281 = vld [vmem:[%s276 + $0x10] sm:$0xf]
    %v282 = vld [vmem:[%s276 + $0x14] sm:$0xf]
    %v283 = vld [vmem:[%s276 + $0x18] sm:$0xf]
    %v284 = vld [vmem:[%s276 + $0x1c] sm:$0xf]
    %v285 = vld [vmem:[%s276 + $0x20] sm:$0xf]
    %v286 = vld [vmem:[%s276 + $0x24] sm:$0xf]
    %v287 = vld [vmem:[%s276 + $0x28] sm:$0xf]
    %v288 = vld [vmem:[%s276 + $0x2c] sm:$0xf]
    %v289 = vld [vmem:[%s276 + $0x30] sm:$0xf]
    %v290 = vld [vmem:[%s276 + $0x34] sm:$0xf]
    %v291 = vld [vmem:[%s276 + $0x38] sm:$0xf]
    %v292 = vld [vmem:[%s276 + $0x3c] sm:$0xf]
    %v293 = vunpack.c.l.b16 %v241
    %v294 = vunpack.c.l.b16 %v251
    %v295 = vunpack.c.l.b16 %v265
    %v296 = vunpack.c.l.b16 %v275
    %v297 = vpack.c.b16 %v294, %v293
    %v298 = vpack.c.b16 %v296, %v295
    %v317 = vunpack.c.l.b16 %v277
    %v318 = vunpack.c.l.b16 %v278
    %v319 = vunpack.c.l.b16 %v279
    %v320 = vunpack.c.l.b16 %v280
    %v321 = vunpack.c.l.b16 %v281
    %v322 = vunpack.c.l.b16 %v282
    %v323 = vunpack.c.l.b16 %v283
    %v324 = vunpack.c.l.b16 %v284
    %v325 = vunpack.c.l.b16 %v285
    %v326 = vunpack.c.l.b16 %v286
    %v327 = vunpack.c.l.b16 %v287
    %v328 = vunpack.c.l.b16 %v288
    %v329 = vunpack.c.l.b16 %v289
    %v330 = vunpack.c.l.b16 %v290
    %v331 = vunpack.c.l.b16 %v291
    %v332 = vunpack.c.l.b16 %v292
    %v333 = vpack.c.b16 %v318, %v317
    %v334 = vpack.c.b16 %v320, %v319
    %v335 = vpack.c.b16 %v322, %v321
    %v336 = vpack.c.b16 %v324, %v323
    %v337 = vpack.c.b16 %v326, %v325
    %v338 = vpack.c.b16 %v328, %v327
    %v339 = vpack.c.b16 %v330, %v329
    %v340 = vpack.c.b16 %v332, %v331
    %349 = vmatprep.subr.bf16.mxu0 0
    %350 = vmatpush1.bf16.msra.mxu0 %v333
    %351 = vmatprep.subr.bf16.mxu0 0
    %352 = vmatpush1.bf16.msra.mxu0 %v334
    %353 = vmatprep.subr.bf16.mxu0 0
    %354 = vmatpush1.bf16.msra.mxu0 %v335
    %355 = vmatprep.subr.bf16.mxu0 0
    %356 = vmatpush1.bf16.msra.mxu0 %v336
    %357 = vmatprep.subr.bf16.mxu0 0
    %358 = vmatpush1.bf16.msra.mxu0 %v337
    %359 = vmatprep.subr.bf16.mxu0 0
    %360 = vmatpush1.bf16.msra.mxu0 %v338
    %361 = vmatprep.subr.bf16.mxu0 0
    %362 = vmatpush1.bf16.msra.mxu0 %v339
    %363 = vmatprep.subr.bf16.mxu0 0
    %364 = vmatpush1.bf16.msra.mxu0 %v340
    %365 = vmatprep.subr.bf16.mxu0 0
    %366 = vmatpush1.bf16.msra.mxu0 0
    %367 = vmatprep.subr.bf16.mxu0 0
    %368 = vmatpush1.bf16.msra.mxu0 0
    %369 = vmatprep.subr.bf16.mxu0 0
    %370 = vmatpush1.bf16.msra.mxu0 0
    %371 = vmatprep.subr.bf16.mxu0 0
    %372 = vmatpush1.bf16.msra.mxu0 0
    %373 = vmatprep.subr.bf16.mxu0 0
    %374 = vmatpush1.bf16.msra.mxu0 0
    %375 = vmatprep.subr.bf16.mxu0 0
    %376 = vmatpush1.bf16.msra.mxu0 0
    %377 = vmatprep.subr.bf16.mxu0 0
    %378 = vmatpush1.bf16.msra.mxu0 0
    %379 = vmatprep.subr.bf16.mxu0 0
    %380 = vmatpush1.bf16.msra.mxu0 0
    %381 = vmatprep.mubr.bf16.mxu0 0
    %382 = vmatmul.mubr.bf16.gmra.mrb[0].mxu0 %v297
    %v383 = vpop.f32.mrb[0].mxu0
    %v384 = vadd.f32 0.0, %v383
    %v385 = vpop.f32.mrb[0].mxu0
    %v386 = vpop.f32.mrb[0].mxu0
    %v387 = vadd.f32 0.0, %v386
    %v388 = vpop.f32.mrb[0].mxu0
    %389 = vmatprep.mubr.bf16.mxu0 0
    %390 = vmatmul.mubr.bf16.gmra.mrb[0].mxu0 %v298
    %v391 = vpop.f32.mrb[0].mxu0
    %v392 = vadd.f32 0.0, %v391
    %v393 = vpop.f32.mrb[0].mxu0
    %v394 = vpop.f32.mrb[0].mxu0
    %v395 = vadd.f32 0.0, %v394
    %v396 = vpop.f32.mrb[0].mxu0
    %397 = vdwg.mxu0
    %v402 = vunpack.c.l.b16 %v203
    %v403 = vunpack.c.l.b16 %v204
    %v404 = vunpack.c.l.b16 %v205
    %v405 = vunpack.c.l.b16 %v206
    %v406 = vpack.c.b16 %v403, %v402
    %v407 = vpack.c.b16 %v405, %v404
    %v426 = vunpack.c.l.b16 %v207
    %v427 = vunpack.c.l.b16 %v208
    %v428 = vunpack.c.l.b16 %v209
    %v429 = vunpack.c.l.b16 %v210
    %v430 = vunpack.c.l.b16 %v211
    %v431 = vunpack.c.l.b16 %v212
    %v432 = vunpack.c.l.b16 %v213
    %v433 = vunpack.c.l.b16 %v214
    %v434 = vunpack.c.l.b16 %v215
    %v435 = vunpack.c.l.b16 %v216
    %v436 = vunpack.c.l.b16 %v217
    %v437 = vunpack.c.l.b16 %v218
    %v438 = vunpack.c.l.b16 %v219
    %v439 = vunpack.c.l.b16 %v220
    %v440 = vunpack.c.l.b16 %v221
    %v441 = vunpack.c.l.b16 %v222
    %v442 = vpack.c.b16 %v427, %v426
    %v443 = vpack.c.b16 %v429, %v428
    %v444 = vpack.c.b16 %v431, %v430
    %v445 = vpack.c.b16 %v433, %v432
    %v446 = vpack.c.b16 %v435, %v434
    %v447 = vpack.c.b16 %v437, %v436
    %v448 = vpack.c.b16 %v439, %v438
    %v449 = vpack.c.b16 %v441, %v440
    %458 = vmatprep.subr.bf16.mxu0 0
    %459 = vmatpush1.bf16.msra.mxu0 %v442
    %460 = vmatprep.subr.bf16.mxu0 0
    %461 = vmatpush1.bf16.msra.mxu0 %v443
    %462 = vmatprep.subr.bf16.mxu0 0
    %463 = vmatpush1.bf16.msra.mxu0 %v444
    %464 = vmatprep.subr.bf16.mxu0 0
    %465 = vmatpush1.bf16.msra.mxu0 %v445
    %466 = vmatprep.subr.bf16.mxu0 0
    %467 = vmatpush1.bf16.msra.mxu0 %v446
    %468 = vmatprep.subr.bf16.mxu0 0
    %469 = vmatpush1.bf16.msra.mxu0 %v447
    %470 = vmatprep.subr.bf16.mxu0 0
    %471 = vmatpush1.bf16.msra.mxu0 %v448
    %472 = vmatprep.subr.bf16.mxu0 0
    %473 = vmatpush1.bf16.msra.mxu0 %v449
    %474 = vmatprep.subr.bf16.mxu0 0
    %475 = vmatpush1.bf16.msra.mxu0 0
    %476 = vmatprep.subr.bf16.mxu0 0
    %477 = vmatpush1.bf16.msra.mxu0 0
    %478 = vmatprep.subr.bf16.mxu0 0
    %479 = vmatpush1.bf16.msra.mxu0 0
    %480 = vmatprep.subr.bf16.mxu0 0
    %481 = vmatpush1.bf16.msra.mxu0 0
    %482 = vmatprep.subr.bf16.mxu0 0
    %483 = vmatpush1.bf16.msra.mxu0 0
    %484 = vmatprep.subr.bf16.mxu0 0
    %485 = vmatpush1.bf16.msra.mxu0 0
    %486 = vmatprep.subr.bf16.mxu0 0
    %487 = vmatpush1.bf16.msra.mxu0 0
    %488 = vmatprep.subr.bf16.mxu0 0
    %489 = vmatpush1.bf16.msra.mxu0 0
    %490 = vmatprep.mubr.bf16.mxu0 0
    %491 = vmatmul.mubr.bf16.gmra.mrb[0].mxu0 %v406
    %v492 = vpop.f32.mrb[0].mxu0
    %v493 = vadd.f32 %v384, %v492
    %v494 = vpop.f32.mrb[0].mxu0
    %v495 = vpop.f32.mrb[0].mxu0
    %v496 = vadd.f32 %v387, %v495
    %v497 = vpop.f32.mrb[0].mxu0
    %498 = vmatprep.mubr.bf16.mxu0 0
    %499 = vmatmul.mubr.bf16.gmra.mrb[0].mxu0 %v407
    %v500 = vpop.f32.mrb[0].mxu0
    %v501 = vadd.f32 %v392, %v500
    %v502 = vpop.f32.mrb[0].mxu0
    %v503 = vpop.f32.mrb[0].mxu0
    %v504 = vadd.f32 %v395, %v503
    %v505 = vpop.f32.mrb[0].mxu0
    %506 = vdwg.mxu0
    %v507 = vld [vmem:[#allocation2] sm:$0xe]
    %v508 = vld [vmem:[#allocation2 + $0xc] sm:$0xe]
    %vm513 = vcmask 1042432
    %vm514 = vcmask 1046532
    %vm515 = vmor %vm513, %vm514
    %v516 = vrot.slane %v507, 5
    %v517 = vrot.slane %v516, 4
    %v518 = vrot.slane %v204, 5
    %v519 = vsel %vm515, %v517, %v518
    %v520 = vrot.slane %v518, 4
    %v521 = vrot.slane %v223, 5
    %v522 = vsel %vm515, %v520, %v521
    %v523 = vrot.slane %v508, 5
    %v524 = vrot.slane %v523, 4
    %v525 = vrot.slane %v206, 5
    %v526 = vsel %vm515, %v524, %v525
    %v527 = vrot.slane %v525, 4
    %v528 = vrot.slane %v224, 5
    %v529 = vsel %vm515, %v527, %v528
    %s530 = scalar_lea.vmem [#allocation7], 128
    %v531 = vld [vmem:[%s530] sm:$0xf]
    %v532 = vld [vmem:[%s530 + $0x4] sm:$0xf]
    %v533 = vld [vmem:[%s530 + $0x8] sm:$0xf]
    %v534 = vld [vmem:[%s530 + $0xc] sm:$0xf]
    %v535 = vld [vmem:[%s530 + $0x10] sm:$0xf]
    %v536 = vld [vmem:[%s530 + $0x14] sm:$0xf]
    %v537 = vld [vmem:[%s530 + $0x18] sm:$0xf]
    %v538 = vld [vmem:[%s530 + $0x1c] sm:$0xf]
    %v539 = vld [vmem:[%s530 + $0x20] sm:$0xf]
    %v540 = vld [vmem:[%s530 + $0x24] sm:$0xf]
    %v541 = vld [vmem:[%s530 + $0x28] sm:$0xf]
    %v542 = vld [vmem:[%s530 + $0x2c] sm:$0xf]
    %v543 = vld [vmem:[%s530 + $0x30] sm:$0xf]
    %v544 = vld [vmem:[%s530 + $0x34] sm:$0xf]
    %v545 = vld [vmem:[%s530 + $0x38] sm:$0xf]
    %v546 = vld [vmem:[%s530 + $0x3c] sm:$0xf]
    %v547 = vunpack.c.l.b16 %v519
    %v548 = vunpack.c.l.b16 %v522
    %v549 = vunpack.c.l.b16 %v526
    %v550 = vunpack.c.l.b16 %v529
    %v551 = vpack.c.b16 %v548, %v547
    %v552 = vpack.c.b16 %v550, %v549
    %v571 = vunpack.c.l.b16 %v531
    %v572 = vunpack.c.l.b16 %v532
    %v573 = vunpack.c.l.b16 %v533
    %v574 = vunpack.c.l.b16 %v534
    %v575 = vunpack.c.l.b16 %v535
    %v576 = vunpack.c.l.b16 %v536
    %v577 = vunpack.c.l.b16 %v537
    %v578 = vunpack.c.l.b16 %v538
    %v579 = vunpack.c.l.b16 %v539
    %v580 = vunpack.c.l.b16 %v540
    %v581 = vunpack.c.l.b16 %v541
    %v582 = vunpack.c.l.b16 %v542
    %v583 = vunpack.c.l.b16 %v543
    %v584 = vunpack.c.l.b16 %v544
    %v585 = vunpack.c.l.b16 %v545
    %v586 = vunpack.c.l.b16 %v546
    %v587 = vpack.c.b16 %v572, %v571
    %v588 = vpack.c.b16 %v574, %v573
    %v589 = vpack.c.b16 %v576, %v575
    %v590 = vpack.c.b16 %v578, %v577
    %v591 = vpack.c.b16 %v580, %v579
    %v592 = vpack.c.b16 %v582, %v581
    %v593 = vpack.c.b16 %v584, %v583
    %v594 = vpack.c.b16 %v586, %v585
    %603 = vmatprep.subr.bf16.mxu0 0
    %604 = vmatpush1.bf16.msra.mxu0 %v587
    %605 = vmatprep.subr.bf16.mxu0 0
    %606 = vmatpush1.bf16.msra.mxu0 %v588
    %607 = vmatprep.subr.bf16.mxu0 0
    %608 = vmatpush1.bf16.msra.mxu0 %v589
    %609 = vmatprep.subr.bf16.mxu0 0
    %610 = vmatpush1.bf16.msra.mxu0 %v590
    %611 = vmatprep.subr.bf16.mxu0 0
    %612 = vmatpush1.bf16.msra.mxu0 %v591
    %613 = vmatprep.subr.bf16.mxu0 0
    %614 = vmatpush1.bf16.msra.mxu0 %v592
    %615 = vmatprep.subr.bf16.mxu0 0
    %616 = vmatpush1.bf16.msra.mxu0 %v593
    %617 = vmatprep.subr.bf16.mxu0 0
    %618 = vmatpush1.bf16.msra.mxu0 %v594
    %619 = vmatprep.subr.bf16.mxu0 0
    %620 = vmatpush1.bf16.msra.mxu0 0
    %621 = vmatprep.subr.bf16.mxu0 0
    %622 = vmatpush1.bf16.msra.mxu0 0
    %623 = vmatprep.subr.bf16.mxu0 0
    %624 = vmatpush1.bf16.msra.mxu0 0
    %625 = vmatprep.subr.bf16.mxu0 0
    %626 = vmatpush1.bf16.msra.mxu0 0
    %627 = vmatprep.subr.bf16.mxu0 0
    %628 = vmatpush1.bf16.msra.mxu0 0
    %629 = vmatprep.subr.bf16.mxu0 0
    %630 = vmatpush1.bf16.msra.mxu0 0
    %631 = vmatprep.subr.bf16.mxu0 0
    %632 = vmatpush1.bf16.msra.mxu0 0
    %633 = vmatprep.subr.bf16.mxu0 0
    %634 = vmatpush1.bf16.msra.mxu0 0
    %635 = vmatprep.mubr.bf16.mxu0 0
    %636 = vmatmul.mubr.bf16.gmra.mrb[0].mxu0 %v551
    %v637 = vpop.f32.mrb[0].mxu0
    %v638 = vadd.f32 0.0, %v637
    %v639 = vpop.f32.mrb[0].mxu0
    %v640 = vpop.f32.mrb[0].mxu0
    %v641 = vadd.f32 0.0, %v640
    %v642 = vpop.f32.mrb[0].mxu0
    %643 = vmatprep.mubr.bf16.mxu0 0
    %644 = vmatmul.mubr.bf16.gmra.mrb[0].mxu0 %v552
    %v645 = vpop.f32.mrb[0].mxu0
    %v646 = vadd.f32 0.0, %v645
    %v647 = vpop.f32.mrb[0].mxu0
    %v648 = vpop.f32.mrb[0].mxu0
    %v649 = vadd.f32 0.0, %v648
    %v650 = vpop.f32.mrb[0].mxu0
    %651 = vdwg.mxu0
    %v652 = vadd.f32 %v493, %v638
    %v653 = vadd.f32 %v496, %v641
    %v654 = vadd.f32 %v501, %v646
    %v655 = vadd.f32 %v504, %v649
    %v656 = vld [vmem:[#allocation9] sm:$0x1]
    %v658 = vlaneseq
    %v659 = vshrl.u32 %v658, 7
    %v660 = vsub.s32 0, %v659
    %v661 = vrot.slane %v656, %v660
    %v663 = vadd.f32 %v652, %v661
    %v664 = vadd.f32 %v653, %v661
    %v665 = vadd.f32 %v654, %v661
    %v666 = vadd.f32 %v655, %v661
    %vm667 = vcmask 1040384
    %vm668 = vsmask.f32 256
    %vm669 = vmand %vm667, %vm668
    %v670 = vld [vmem:[#allocation3] sm:$0x1]
    %v671 = vsel %vm669, 0, %v670
    %672 = vst [vmem:[#allocation3] sm:$0x1] %v671
    %v673 = vld [vmem:[#allocation3 + $0xc] sm:$0x1]
    %v674 = vsel %vm669, 0, %v673
    %675 = vst [vmem:[#allocation3 + $0xc] sm:$0x1] %v674
    %vm676 = vsmask.f32 7938
    %vm677 = vmand %vm667, %vm676
    %v678 = vld [vmem:[#allocation3 + $0x8] sm:$0x1]
    %v679 = vsel %vm677, 0, %v678
    %680 = vst [vmem:[#allocation3 + $0x8] sm:$0x1] %v679
    %v681 = vld [vmem:[#allocation3 + $0x14] sm:$0x1]
    %v682 = vsel %vm677, 0, %v681
    %683 = vst [vmem:[#allocation3 + $0x14] sm:$0x1] %v682
    %v684 = vsub.f32 0.0, %v663
    %v685 = vsub.f32 0.0, %v664
    %v686 = vsub.f32 0.0, %v665
    %v687 = vsub.f32 0.0, %v666
    %v688 = vmin.f32 %v684, 60.0
    %v689 = vmin.f32 %v685, 60.0
    %v690 = vmin.f32 %v686, 60.0
    %v691 = vmin.f32 %v687, 60.0
    %v692 = vmul.f32 %v688, 1.442695
    %v693 = vpow.pop %v692
    %v694 = vmul.f32 %v689, 1.442695
    %v695 = vpow.pop %v694
    %v696 = vmul.f32 %v690, 1.442695
    %v697 = vpow.pop %v696
    %v698 = vmul.f32 %v691, 1.442695
    %v699 = vpow.pop %v698
    %v700 = vadd.f32 %v693, 1.0
    %v701 = vadd.f32 %v695, 1.0
    %v702 = vadd.f32 %v697, 1.0
    %v703 = vadd.f32 %v699, 1.0
    %v704 = vrcp.pop %v700
    %v705 = vrcp.pop %v701
    %v706 = vrcp.pop %v702
    %v707 = vrcp.pop %v703
    %v708 = vmul.f32 %v663, %v704
    %v709 = vmul.f32 %v664, %v705
    %v710 = vmul.f32 %v665, %v706
    %v711 = vmul.f32 %v666, %v707
    %v712 = vpack.c.bf16 %v709, %v708
    %v713 = vpack.c.bf16 %v711, %v710
    %v716 = vunpack.c.l.b16 %v712
    %v717 = vunpack.c.h.b16 %v712
    %v718 = vunpack.c.l.b16 %v713
    %v719 = vunpack.c.h.b16 %v713
    %v720 = vpack.c.b16 %v716, %v716
    %v721 = vpack.c.b16 %v717, %v717
    %v722 = vpack.c.b16 %v718, %v718
    %v723 = vpack.c.b16 %v719, %v719
    %vm724 = vsmask.f32 4368
    %vm725 = vmor %vm668, %vm724
    %v727 = vshrl.u32 %v720, 16
    %v729 = vrot.slane %v727, 7
    %v730 = vshll.u32 %v720, 16
    %v732 = vor.u32 %v729, %v730
    %v733 = vrot.slane %v729, 4
    %v735 = vshrl.u32 %v721, 16
    %v737 = vrot.slane %v735, 7
    %v738 = vshll.u32 %v721, 16
    %v740 = vor.u32 %v737, %v738
    %v741 = vsel %vm725, %v733, %v740
    %v742 = vrot.slane %v737, 4
    %v744 = vshrl.u32 %v722, 16
    %v746 = vrot.slane %v744, 7
    %v747 = vshll.u32 %v722, 16
    %v749 = vor.u32 %v746, %v747
    %v750 = vrot.slane %v746, 4
    %v752 = vshrl.u32 %v723, 16
    %v754 = vrot.slane %v752, 7
    %v755 = vshll.u32 %v723, 16
    %v757 = vor.u32 %v754, %v755
    %v758 = vsel %vm725, %v750, %v757
    %v759 = vrot.slane %v754, 4
    %vm766 = vcmask 1043456
    %vm767 = vmand %vm766, %vm676
    %v768 = vld [vmem:[#allocation3] sm:$0xf]
    %v769 = vsel %vm767, %v732, %v768
    %770 = vst [vmem:[#allocation3] sm:$0xf] %v769
    %771 = vst [vmem:[#allocation3 + $0x4] sm:$0xf] %v741
    %v772 = vld [vmem:[#allocation3 + $0x8] sm:$0x1]
    %v773 = vsel %vm669, %v742, %v772
    %774 = vst [vmem:[#allocation3 + $0x8] sm:$0x1] %v773
    %v775 = vld [vmem:[#allocation3 + $0xc] sm:$0xf]
    %v776 = vsel %vm767, %v749, %v775
    %777 = vst [vmem:[#allocation3 + $0xc] sm:$0xf] %v776
    %778 = vst [vmem:[#allocation3 + $0x10] sm:$0xf] %v758
    %v779 = vld [vmem:[#allocation3 + $0x14] sm:$0x1]
    %v780 = vsel %vm669, %v759, %v779
    %781 = vst [vmem:[#allocation3 + $0x14] sm:$0x1] %v780
    %v782 = vld [vmem:[#allocation3] sm:$0xf]
    %v783 = vld [vmem:[#allocation3 + $0x4] sm:$0xf]
    %v784 = vld [vmem:[#allocation3 + $0xc] sm:$0xf]
    %v785 = vld [vmem:[#allocation3 + $0x10] sm:$0xf]
    %v786 = vld [vmem:[#allocation10] sm:$0xf]
    %v787 = vld [vmem:[#allocation10 + $0x4] sm:$0xf]
    %v788 = vld [vmem:[#allocation10 + $0x8] sm:$0xf]
    %v789 = vld [vmem:[#allocation10 + $0xc] sm:$0xf]
    %v790 = vld [vmem:[#allocation10 + $0x10] sm:$0xf]
    %v791 = vld [vmem:[#allocation10 + $0x14] sm:$0xf]
    %v792 = vld [vmem:[#allocation10 + $0x18] sm:$0xf]
    %v793 = vld [vmem:[#allocation10 + $0x1c] sm:$0xf]
    %v794 = vld [vmem:[#allocation10 + $0x20] sm:$0xf]
    %v795 = vld [vmem:[#allocation10 + $0x24] sm:$0xf]
    %v796 = vld [vmem:[#allocation10 + $0x28] sm:$0xf]
    %v797 = vld [vmem:[#allocation10 + $0x2c] sm:$0xf]
    %v798 = vld [vmem:[#allocation10 + $0x30] sm:$0xf]
    %v799 = vld [vmem:[#allocation10 + $0x34] sm:$0xf]
    %v800 = vld [vmem:[#allocation10 + $0x38] sm:$0xf]
    %v801 = vld [vmem:[#allocation10 + $0x3c] sm:$0xf]
    %v802 = vld [vmem:[#allocation3 + $0x8] sm:$0x1]
    %v803 = vld [vmem:[#allocation3 + $0x14] sm:$0x1]
    %v805 = vshrl.u32 %v782, 16
    %v807 = vrot.slane %v805, 4
    %v808 = vshll.u32 %v782, 16
    %v810 = vrot.slane %v808, 5
    %v811 = vor.u32 %v807, %v810
    %v812 = vrot.slane %v811, 4
    %v814 = vshll.u32 %v783, 16
    %v816 = vrot.slane %v814, 5
    %v817 = vsel %vm227, %v812, %v816
    %v818 = vshrl.u32 %v783, 16
    %v820 = vrot.slane %v818, 4
    %v821 = vor.u32 %v820, %v816
    %v822 = vrot.slane %v821, 4
    %v824 = vshll.u32 %v802, 16
    %v826 = vrot.slane %v824, 5
    %v827 = vsel %vm227, %v822, %v826
    %v829 = vshrl.u32 %v784, 16
    %v831 = vrot.slane %v829, 4
    %v832 = vshll.u32 %v784, 16
    %v834 = vrot.slane %v832, 5
    %v835 = vor.u32 %v831, %v834
    %v836 = vrot.slane %v835, 4
    %v838 = vshll.u32 %v785, 16
    %v840 = vrot.slane %v838, 5
    %v841 = vsel %vm227, %v836, %v840
    %v842 = vshrl.u32 %v785, 16
    %v844 = vrot.slane %v842, 4
    %v845 = vor.u32 %v844, %v840
    %v846 = vrot.slane %v845, 4
    %v848 = vshll.u32 %v803, 16
    %v850 = vrot.slane %v848, 5
    %v851 = vsel %vm227, %v846, %v850
    %s852 = scalar_lea.vmem [#allocation10], 64
    %v853 = vld [vmem:[%s852] sm:$0xf]
    %v854 = vld [vmem:[%s852 + $0x4] sm:$0xf]
    %v855 = vld [vmem:[%s852 + $0x8] sm:$0xf]
    %v856 = vld [vmem:[%s852 + $0xc] sm:$0xf]
    %v857 = vld [vmem:[%s852 + $0x10] sm:$0xf]
    %v858 = vld [vmem:[%s852 + $0x14] sm:$0xf]
    %v859 = vld [vmem:[%s852 + $0x18] sm:$0xf]
    %v860 = vld [vmem:[%s852 + $0x1c] sm:$0xf]
    %v861 = vld [vmem:[%s852 + $0x20] sm:$0xf]
    %v862 = vld [vmem:[%s852 + $0x24] sm:$0xf]
    %v863 = vld [vmem:[%s852 + $0x28] sm:$0xf]
    %v864 = vld [vmem:[%s852 + $0x2c] sm:$0xf]
    %v865 = vld [vmem:[%s852 + $0x30] sm:$0xf]
    %v866 = vld [vmem:[%s852 + $0x34] sm:$0xf]
    %v867 = vld [vmem:[%s852 + $0x38] sm:$0xf]
    %v868 = vld [vmem:[%s852 + $0x3c] sm:$0xf]
    %v869 = vunpack.c.l.b16 %v817
    %v870 = vunpack.c.l.b16 %v827
    %v871 = vunpack.c.l.b16 %v841
    %v872 = vunpack.c.l.b16 %v851
    %v873 = vpack.c.b16 %v870, %v869
    %v874 = vpack.c.b16 %v872, %v871
    %v893 = vunpack.c.l.b16 %v853
    %v894 = vunpack.c.l.b16 %v854
    %v895 = vunpack.c.l.b16 %v855
    %v896 = vunpack.c.l.b16 %v856
    %v897 = vunpack.c.l.b16 %v857
    %v898 = vunpack.c.l.b16 %v858
    %v899 = vunpack.c.l.b16 %v859
    %v900 = vunpack.c.l.b16 %v860
    %v901 = vunpack.c.l.b16 %v861
    %v902 = vunpack.c.l.b16 %v862
    %v903 = vunpack.c.l.b16 %v863
    %v904 = vunpack.c.l.b16 %v864
    %v905 = vunpack.c.l.b16 %v865
    %v906 = vunpack.c.l.b16 %v866
    %v907 = vunpack.c.l.b16 %v867
    %v908 = vunpack.c.l.b16 %v868
    %v909 = vpack.c.b16 %v894, %v893
    %v910 = vpack.c.b16 %v896, %v895
    %v911 = vpack.c.b16 %v898, %v897
    %v912 = vpack.c.b16 %v900, %v899
    %v913 = vpack.c.b16 %v902, %v901
    %v914 = vpack.c.b16 %v904, %v903
    %v915 = vpack.c.b16 %v906, %v905
    %v916 = vpack.c.b16 %v908, %v907
    %925 = vmatprep.subr.bf16.mxu0 0
    %926 = vmatpush1.bf16.msra.mxu0 %v909
    %927 = vmatprep.subr.bf16.mxu0 0
    %928 = vmatpush1.bf16.msra.mxu0 %v910
    %929 = vmatprep.subr.bf16.mxu0 0
    %930 = vmatpush1.bf16.msra.mxu0 %v911
    %931 = vmatprep.subr.bf16.mxu0 0
    %932 = vmatpush1.bf16.msra.mxu0 %v912
    %933 = vmatprep.subr.bf16.mxu0 0
    %934 = vmatpush1.bf16.msra.mxu0 %v913
    %935 = vmatprep.subr.bf16.mxu0 0
    %936 = vmatpush1.bf16.msra.mxu0 %v914
    %937 = vmatprep.subr.bf16.mxu0 0
    %938 = vmatpush1.bf16.msra.mxu0 %v915
    %939 = vmatprep.subr.bf16.mxu0 0
    %940 = vmatpush1.bf16.msra.mxu0 %v916
    %941 = vmatprep.subr.bf16.mxu0 0
    %942 = vmatpush1.bf16.msra.mxu0 0
    %943 = vmatprep.subr.bf16.mxu0 0
    %944 = vmatpush1.bf16.msra.mxu0 0
    %945 = vmatprep.subr.bf16.mxu0 0
    %946 = vmatpush1.bf16.msra.mxu0 0
    %947 = vmatprep.subr.bf16.mxu0 0
    %948 = vmatpush1.bf16.msra.mxu0 0
    %949 = vmatprep.subr.bf16.mxu0 0
    %950 = vmatpush1.bf16.msra.mxu0 0
    %951 = vmatprep.subr.bf16.mxu0 0
    %952 = vmatpush1.bf16.msra.mxu0 0
    %953 = vmatprep.subr.bf16.mxu0 0
    %954 = vmatpush1.bf16.msra.mxu0 0
    %955 = vmatprep.subr.bf16.mxu0 0
    %956 = vmatpush1.bf16.msra.mxu0 0
    %957 = vmatprep.mubr.bf16.mxu0 0
    %958 = vmatmul.mubr.bf16.gmra.mrb[0].mxu0 %v873
    %v959 = vpop.f32.mrb[0].mxu0
    %v960 = vadd.f32 0.0, %v959
    %v961 = vpop.f32.mrb[0].mxu0
    %v962 = vpop.f32.mrb[0].mxu0
    %v963 = vadd.f32 0.0, %v962
    %v964 = vpop.f32.mrb[0].mxu0
    %965 = vmatprep.mubr.bf16.mxu0 0
    %966 = vmatmul.mubr.bf16.gmra.mrb[0].mxu0 %v874
    %v967 = vpop.f32.mrb[0].mxu0
    %v968 = vadd.f32 0.0, %v967
    %v969 = vpop.f32.mrb[0].mxu0
    %v970 = vpop.f32.mrb[0].mxu0
    %v971 = vadd.f32 0.0, %v970
    %v972 = vpop.f32.mrb[0].mxu0
    %973 = vdwg.mxu0
    %v978 = vunpack.c.l.b16 %v782
    %v979 = vunpack.c.l.b16 %v783
    %v980 = vunpack.c.l.b16 %v784
    %v981 = vunpack.c.l.b16 %v785
    %v982 = vpack.c.b16 %v979, %v978
    %v983 = vpack.c.b16 %v981, %v980
    %v1002 = vunpack.c.l.b16 %v786
    %v1003 = vunpack.c.l.b16 %v787
    %v1004 = vunpack.c.l.b16 %v788
    %v1005 = vunpack.c.l.b16 %v789
    %v1006 = vunpack.c.l.b16 %v790
    %v1007 = vunpack.c.l.b16 %v791
    %v1008 = vunpack.c.l.b16 %v792
    %v1009 = vunpack.c.l.b16 %v793
    %v1010 = vunpack.c.l.b16 %v794
    %v1011 = vunpack.c.l.b16 %v795
    %v1012 = vunpack.c.l.b16 %v796
    %v1013 = vunpack.c.l.b16 %v797
    %v1014 = vunpack.c.l.b16 %v798
    %v1015 = vunpack.c.l.b16 %v799
    %v1016 = vunpack.c.l.b16 %v800
    %v1017 = vunpack.c.l.b16 %v801
    %v1018 = vpack.c.b16 %v1003, %v1002
    %v1019 = vpack.c.b16 %v1005, %v1004
    %v1020 = vpack.c.b16 %v1007, %v1006
    %v1021 = vpack.c.b16 %v1009, %v1008
    %v1022 = vpack.c.b16 %v1011, %v1010
    %v1023 = vpack.c.b16 %v1013, %v1012
    %v1024 = vpack.c.b16 %v1015, %v1014
    %v1025 = vpack.c.b16 %v1017, %v1016
    %1034 = vmatprep.subr.bf16.mxu0 0
    %1035 = vmatpush1.bf16.msra.mxu0 %v1018
    %1036 = vmatprep.subr.bf16.mxu0 0
    %1037 = vmatpush1.bf16.msra.mxu0 %v1019
    %1038 = vmatprep.subr.bf16.mxu0 0
    %1039 = vmatpush1.bf16.msra.mxu0 %v1020
    %1040 = vmatprep.subr.bf16.mxu0 0
    %1041 = vmatpush1.bf16.msra.mxu0 %v1021
    %1042 = vmatprep.subr.bf16.mxu0 0
    %1043 = vmatpush1.bf16.msra.mxu0 %v1022
    %1044 = vmatprep.subr.bf16.mxu0 0
    %1045 = vmatpush1.bf16.msra.mxu0 %v1023
    %1046 = vmatprep.subr.bf16.mxu0 0
    %1047 = vmatpush1.bf16.msra.mxu0 %v1024
    %1048 = vmatprep.subr.bf16.mxu0 0
    %1049 = vmatpush1.bf16.msra.mxu0 %v1025
    %1050 = vmatprep.subr.bf16.mxu0 0
    %1051 = vmatpush1.bf16.msra.mxu0 0
    %1052 = vmatprep.subr.bf16.mxu0 0
    %1053 = vmatpush1.bf16.msra.mxu0 0
    %1054 = vmatprep.subr.bf16.mxu0 0
    %1055 = vmatpush1.bf16.msra.mxu0 0
    %1056 = vmatprep.subr.bf16.mxu0 0
    %1057 = vmatpush1.bf16.msra.mxu0 0
    %1058 = vmatprep.subr.bf16.mxu0 0
    %1059 = vmatpush1.bf16.msra.mxu0 0
    %1060 = vmatprep.subr.bf16.mxu0 0
    %1061 = vmatpush1.bf16.msra.mxu0 0
    %1062 = vmatprep.subr.bf16.mxu0 0
    %1063 = vmatpush1.bf16.msra.mxu0 0
    %1064 = vmatprep.subr.bf16.mxu0 0
    %1065 = vmatpush1.bf16.msra.mxu0 0
    %1066 = vmatprep.mubr.bf16.mxu0 0
    %1067 = vmatmul.mubr.bf16.gmra.mrb[0].mxu0 %v982
    %v1068 = vpop.f32.mrb[0].mxu0
    %v1069 = vadd.f32 %v960, %v1068
    %v1070 = vpop.f32.mrb[0].mxu0
    %v1071 = vpop.f32.mrb[0].mxu0
    %v1072 = vadd.f32 %v963, %v1071
    %v1073 = vpop.f32.mrb[0].mxu0
    %1074 = vmatprep.mubr.bf16.mxu0 0
    %1075 = vmatmul.mubr.bf16.gmra.mrb[0].mxu0 %v983
    %v1076 = vpop.f32.mrb[0].mxu0
    %v1077 = vadd.f32 %v968, %v1076
    %v1078 = vpop.f32.mrb[0].mxu0
    %v1079 = vpop.f32.mrb[0].mxu0
    %v1080 = vadd.f32 %v971, %v1079
    %v1081 = vpop.f32.mrb[0].mxu0
    %1082 = vdwg.mxu0
    %v1083 = vld [vmem:[#allocation3] sm:$0xe]
    %v1084 = vld [vmem:[#allocation3 + $0xc] sm:$0xe]
    %v1089 = vrot.slane %v1083, 5
    %v1090 = vrot.slane %v1089, 4
    %v1091 = vrot.slane %v783, 5
    %v1092 = vsel %vm515, %v1090, %v1091
    %v1093 = vrot.slane %v1091, 4
    %v1094 = vrot.slane %v802, 5
    %v1095 = vsel %vm515, %v1093, %v1094
    %v1096 = vrot.slane %v1084, 5
    %v1097 = vrot.slane %v1096, 4
    %v1098 = vrot.slane %v785, 5
    %v1099 = vsel %vm515, %v1097, %v1098
    %v1100 = vrot.slane %v1098, 4
    %v1101 = vrot.slane %v803, 5
    %v1102 = vsel %vm515, %v1100, %v1101
    %s1103 = scalar_lea.vmem [#allocation10], 128
    %v1104 = vld [vmem:[%s1103] sm:$0xf]
    %v1105 = vld [vmem:[%s1103 + $0x4] sm:$0xf]
    %v1106 = vld [vmem:[%s1103 + $0x8] sm:$0xf]
    %v1107 = vld [vmem:[%s1103 + $0xc] sm:$0xf]
    %v1108 = vld [vmem:[%s1103 + $0x10] sm:$0xf]
    %v1109 = vld [vmem:[%s1103 + $0x14] sm:$0xf]
    %v1110 = vld [vmem:[%s1103 + $0x18] sm:$0xf]
    %v1111 = vld [vmem:[%s1103 + $0x1c] sm:$0xf]
    %v1112 = vld [vmem:[%s1103 + $0x20] sm:$0xf]
    %v1113 = vld [vmem:[%s1103 + $0x24] sm:$0xf]
    %v1114 = vld [vmem:[%s1103 + $0x28] sm:$0xf]
    %v1115 = vld [vmem:[%s1103 + $0x2c] sm:$0xf]
    %v1116 = vld [vmem:[%s1103 + $0x30] sm:$0xf]
    %v1117 = vld [vmem:[%s1103 + $0x34] sm:$0xf]
    %v1118 = vld [vmem:[%s1103 + $0x38] sm:$0xf]
    %v1119 = vld [vmem:[%s1103 + $0x3c] sm:$0xf]
    %v1120 = vunpack.c.l.b16 %v1092
    %v1121 = vunpack.c.l.b16 %v1095
    %v1122 = vunpack.c.l.b16 %v1099
    %v1123 = vunpack.c.l.b16 %v1102
    %v1124 = vpack.c.b16 %v1121, %v1120
    %v1125 = vpack.c.b16 %v1123, %v1122
    %v1144 = vunpack.c.l.b16 %v1104
    %v1145 = vunpack.c.l.b16 %v1105
    %v1146 = vunpack.c.l.b16 %v1106
    %v1147 = vunpack.c.l.b16 %v1107
    %v1148 = vunpack.c.l.b16 %v1108
    %v1149 = vunpack.c.l.b16 %v1109
    %v1150 = vunpack.c.l.b16 %v1110
    %v1151 = vunpack.c.l.b16 %v1111
    %v1152 = vunpack.c.l.b16 %v1112
    %v1153 = vunpack.c.l.b16 %v1113
    %v1154 = vunpack.c.l.b16 %v1114
    %v1155 = vunpack.c.l.b16 %v1115
    %v1156 = vunpack.c.l.b16 %v1116
    %v1157 = vunpack.c.l.b16 %v1117
    %v1158 = vunpack.c.l.b16 %v1118
    %v1159 = vunpack.c.l.b16 %v1119
    %v1160 = vpack.c.b16 %v1145, %v1144
    %v1161 = vpack.c.b16 %v1147, %v1146
    %v1162 = vpack.c.b16 %v1149, %v1148
    %v1163 = vpack.c.b16 %v1151, %v1150
    %v1164 = vpack.c.b16 %v1153, %v1152
    %v1165 = vpack.c.b16 %v1155, %v1154
    %v1166 = vpack.c.b16 %v1157, %v1156
    %v1167 = vpack.c.b16 %v1159, %v1158
    %1176 = vmatprep.subr.bf16.mxu0 0
    %1177 = vmatpush1.bf16.msra.mxu0 %v1160
    %1178 = vmatprep.subr.bf16.mxu0 0
    %1179 = vmatpush1.bf16.msra.mxu0 %v1161
    %1180 = vmatprep.subr.bf16.mxu0 0
    %1181 = vmatpush1.bf16.msra.mxu0 %v1162
    %1182 = vmatprep.subr.bf16.mxu0 0
    %1183 = vmatpush1.bf16.msra.mxu0 %v1163
    %1184 = vmatprep.subr.bf16.mxu0 0
    %1185 = vmatpush1.bf16.msra.mxu0 %v1164
    %1186 = vmatprep.subr.bf16.mxu0 0
    %1187 = vmatpush1.bf16.msra.mxu0 %v1165
    %1188 = vmatprep.subr.bf16.mxu0 0
    %1189 = vmatpush1.bf16.msra.mxu0 %v1166
    %1190 = vmatprep.subr.bf16.mxu0 0
    %1191 = vmatpush1.bf16.msra.mxu0 %v1167
    %1192 = vmatprep.subr.bf16.mxu0 0
    %1193 = vmatpush1.bf16.msra.mxu0 0
    %1194 = vmatprep.subr.bf16.mxu0 0
    %1195 = vmatpush1.bf16.msra.mxu0 0
    %1196 = vmatprep.subr.bf16.mxu0 0
    %1197 = vmatpush1.bf16.msra.mxu0 0
    %1198 = vmatprep.subr.bf16.mxu0 0
    %1199 = vmatpush1.bf16.msra.mxu0 0
    %1200 = vmatprep.subr.bf16.mxu0 0
    %1201 = vmatpush1.bf16.msra.mxu0 0
    %1202 = vmatprep.subr.bf16.mxu0 0
    %1203 = vmatpush1.bf16.msra.mxu0 0
    %1204 = vmatprep.subr.bf16.mxu0 0
    %1205 = vmatpush1.bf16.msra.mxu0 0
    %1206 = vmatprep.subr.bf16.mxu0 0
    %1207 = vmatpush1.bf16.msra.mxu0 0
    %1208 = vmatprep.mubr.bf16.mxu0 0
    %1209 = vmatmul.mubr.bf16.gmra.mrb[0].mxu0 %v1124
    %v1210 = vpop.f32.mrb[0].mxu0
    %v1211 = vadd.f32 0.0, %v1210
    %v1212 = vpop.f32.mrb[0].mxu0
    %v1213 = vpop.f32.mrb[0].mxu0
    %v1214 = vadd.f32 0.0, %v1213
    %v1215 = vpop.f32.mrb[0].mxu0
    %1216 = vmatprep.mubr.bf16.mxu0 0
    %1217 = vmatmul.mubr.bf16.gmra.mrb[0].mxu0 %v1125
    %v1218 = vpop.f32.mrb[0].mxu0
    %v1219 = vadd.f32 0.0, %v1218
    %v1220 = vpop.f32.mrb[0].mxu0
    %v1221 = vpop.f32.mrb[0].mxu0
    %v1222 = vadd.f32 0.0, %v1221
    %v1223 = vpop.f32.mrb[0].mxu0
    %1224 = vdwg.mxu0
    %v1225 = vadd.f32 %v1069, %v1211
    %v1226 = vadd.f32 %v1072, %v1214
    %v1227 = vadd.f32 %v1077, %v1219
    %v1228 = vadd.f32 %v1080, %v1222
    %v1229 = vld [vmem:[#allocation12] sm:$0x1]
    %v1231 = vlaneseq
    %v1232 = vshrl.u32 %v1231, 7
    %v1233 = vsub.s32 0, %v1232
    %v1234 = vrot.slane %v1229, %v1233
    %v1236 = vadd.f32 %v1225, %v1234
    %v1237 = vadd.f32 %v1226, %v1234
    %v1238 = vadd.f32 %v1227, %v1234
    %v1239 = vadd.f32 %v1228, %v1234
    %v1240 = vld [vmem:[#allocation4] sm:$0xf]
    %v1241 = vld [vmem:[#allocation4 + $0x4] sm:$0xf]
    %v1242 = vld [vmem:[#allocation4 + $0x8] sm:$0x1]
    %v1243 = vld [vmem:[#allocation4 + $0xc] sm:$0xf]
    %v1244 = vld [vmem:[#allocation4 + $0x10] sm:$0xf]
    %v1245 = vld [vmem:[#allocation4 + $0x14] sm:$0x1]
    %v1247 = vshrl.u32 %v1240, 16
    %v1249 = vrot.slane %v1247, 4
    %v1250 = vshll.u32 %v1240, 16
    %v1252 = vrot.slane %v1250, 5
    %v1253 = vor.u32 %v1249, %v1252
    %v1254 = vrot.slane %v1253, 4
    %v1256 = vshll.u32 %v1241, 16
    %v1258 = vrot.slane %v1256, 5
    %v1259 = vsel %vm227, %v1254, %v1258
    %v1260 = vshrl.u32 %v1241, 16
    %v1262 = vrot.slane %v1260, 4
    %v1263 = vor.u32 %v1262, %v1258
    %v1264 = vrot.slane %v1263, 4
    %v1266 = vshll.u32 %v1242, 16
    %v1268 = vrot.slane %v1266, 5
    %v1269 = vsel %vm227, %v1264, %v1268
    %v1271 = vshrl.u32 %v1243, 16
    %v1273 = vrot.slane %v1271, 4
    %v1274 = vshll.u32 %v1243, 16
    %v1276 = vrot.slane %v1274, 5
    %v1277 = vor.u32 %v1273, %v1276
    %v1278 = vrot.slane %v1277, 4
    %v1280 = vshll.u32 %v1244, 16
    %v1282 = vrot.slane %v1280, 5
    %v1283 = vsel %vm227, %v1278, %v1282
    %v1284 = vshrl.u32 %v1244, 16
    %v1286 = vrot.slane %v1284, 4
    %v1287 = vor.u32 %v1286, %v1282
    %v1288 = vrot.slane %v1287, 4
    %v1290 = vshll.u32 %v1245, 16
    %v1292 = vrot.slane %v1290, 5
    %v1293 = vsel %vm227, %v1288, %v1292
    %v1294 = vld [vmem:[#allocation13] sm:$0xf]
    %v1295 = vld [vmem:[#allocation13 + $0x4] sm:$0xf]
    %v1296 = vld [vmem:[#allocation13 + $0x8] sm:$0xf]
    %v1297 = vld [vmem:[#allocation13 + $0xc] sm:$0xf]
    %v1298 = vld [vmem:[#allocation13 + $0x10] sm:$0xf]
    %v1299 = vld [vmem:[#allocation13 + $0x14] sm:$0xf]
    %v1300 = vld [vmem:[#allocation13 + $0x18] sm:$0xf]
    %v1301 = vld [vmem:[#allocation13 + $0x1c] sm:$0xf]
    %v1302 = vld [vmem:[#allocation13 + $0x20] sm:$0xf]
    %v1303 = vld [vmem:[#allocation13 + $0x24] sm:$0xf]
    %v1304 = vld [vmem:[#allocation13 + $0x28] sm:$0xf]
    %v1305 = vld [vmem:[#allocation13 + $0x2c] sm:$0xf]
    %v1306 = vld [vmem:[#allocation13 + $0x30] sm:$0xf]
    %v1307 = vld [vmem:[#allocation13 + $0x34] sm:$0xf]
    %v1308 = vld [vmem:[#allocation13 + $0x38] sm:$0xf]
    %v1309 = vld [vmem:[#allocation13 + $0x3c] sm:$0xf]
    %v1310 = vld [vmem:[#allocation15] sm:$0x1]
    %v1312 = vlaneseq
    %v1313 = vshrl.u32 %v1312, 7
    %v1314 = vsub.s32 0, %v1313
    %v1315 = vrot.slane %v1310, %v1314
    %v1317 = vunpack.c.l.b16 %v1259
    %v1318 = vunpack.c.l.b16 %v1269
    %v1319 = vunpack.c.l.b16 %v1283
    %v1320 = vunpack.c.l.b16 %v1293
    %v1321 = vpack.c.b16 %v1318, %v1317
    %v1322 = vpack.c.b16 %v1320, %v1319
    %v1341 = vunpack.c.l.b16 %v1294
    %v1342 = vunpack.c.l.b16 %v1295
    %v1343 = vunpack.c.l.b16 %v1296
    %v1344 = vunpack.c.l.b16 %v1297
    %v1345 = vunpack.c.l.b16 %v1298
    %v1346 = vunpack.c.l.b16 %v1299
    %v1347 = vunpack.c.l.b16 %v1300
    %v1348 = vunpack.c.l.b16 %v1301
    %v1349 = vunpack.c.l.b16 %v1302
    %v1350 = vunpack.c.l.b16 %v1303
    %v1351 = vunpack.c.l.b16 %v1304
    %v1352 = vunpack.c.l.b16 %v1305
    %v1353 = vunpack.c.l.b16 %v1306
    %v1354 = vunpack.c.l.b16 %v1307
    %v1355 = vunpack.c.l.b16 %v1308
    %v1356 = vunpack.c.l.b16 %v1309
    %v1357 = vpack.c.b16 %v1342, %v1341
    %v1358 = vpack.c.b16 %v1344, %v1343
    %v1359 = vpack.c.b16 %v1346, %v1345
    %v1360 = vpack.c.b16 %v1348, %v1347
    %v1361 = vpack.c.b16 %v1350, %v1349
    %v1362 = vpack.c.b16 %v1352, %v1351
    %v1363 = vpack.c.b16 %v1354, %v1353
    %v1364 = vpack.c.b16 %v1356, %v1355
    %1373 = vmatprep.subr.bf16.mxu0 0
    %1374 = vmatpush1.bf16.msra.mxu0 %v1357
    %1375 = vmatprep.subr.bf16.mxu0 0
    %1376 = vmatpush1.bf16.msra.mxu0 %v1358
    %1377 = vmatprep.subr.bf16.mxu0 0
    %1378 = vmatpush1.bf16.msra.mxu0 %v1359
    %1379 = vmatprep.subr.bf16.mxu0 0
    %1380 = vmatpush1.bf16.msra.mxu0 %v1360
    %1381 = vmatprep.subr.bf16.mxu0 0
    %1382 = vmatpush1.bf16.msra.mxu0 %v1361
    %1383 = vmatprep.subr.bf16.mxu0 0
    %1384 = vmatpush1.bf16.msra.mxu0 %v1362
    %1385 = vmatprep.subr.bf16.mxu0 0
    %1386 = vmatpush1.bf16.msra.mxu0 %v1363
    %1387 = vmatprep.subr.bf16.mxu0 0
    %1388 = vmatpush1.bf16.msra.mxu0 %v1364
    %1389 = vmatprep.subr.bf16.mxu0 0
    %1390 = vmatpush1.bf16.msra.mxu0 0
    %1391 = vmatprep.subr.bf16.mxu0 0
    %1392 = vmatpush1.bf16.msra.mxu0 0
    %1393 = vmatprep.subr.bf16.mxu0 0
    %1394 = vmatpush1.bf16.msra.mxu0 0
    %1395 = vmatprep.subr.bf16.mxu0 0
    %1396 = vmatpush1.bf16.msra.mxu0 0
    %1397 = vmatprep.subr.bf16.mxu0 0
    %1398 = vmatpush1.bf16.msra.mxu0 0
    %1399 = vmatprep.subr.bf16.mxu0 0
    %1400 = vmatpush1.bf16.msra.mxu0 0
    %1401 = vmatprep.subr.bf16.mxu0 0
    %1402 = vmatpush1.bf16.msra.mxu0 0
    %1403 = vmatprep.subr.bf16.mxu0 0
    %1404 = vmatpush1.bf16.msra.mxu0 0
    %1405 = vmatprep.mubr.bf16.mxu0 0
    %1406 = vmatmul.mubr.bf16.gmra.mrb[0].mxu0 %v1321
    %v1407 = vpop.f32.mrb[0].mxu0
    %v1408 = vadd.f32 %v1315, %v1407
    %v1409 = vpop.f32.mrb[0].mxu0
    %v1410 = vpop.f32.mrb[0].mxu0
    %v1411 = vadd.f32 %v1315, %v1410
    %v1412 = vpop.f32.mrb[0].mxu0
    %1413 = vmatprep.mubr.bf16.mxu0 0
    %1414 = vmatmul.mubr.bf16.gmra.mrb[0].mxu0 %v1322
    %v1415 = vpop.f32.mrb[0].mxu0
    %v1416 = vadd.f32 %v1315, %v1415
    %v1417 = vpop.f32.mrb[0].mxu0
    %v1418 = vpop.f32.mrb[0].mxu0
    %v1419 = vadd.f32 %v1315, %v1418
    %v1420 = vpop.f32.mrb[0].mxu0
    %1421 = vdwg.mxu0
    %v1422 = vadd.f32 %v1236, %v1408
    %v1423 = vadd.f32 %v1237, %v1411
    %v1424 = vadd.f32 %v1238, %v1416
    %v1425 = vadd.f32 %v1239, %v1419
    %v1426 = vpack.c.bf16 %v1423, %v1422
    %v1427 = vpack.c.bf16 %v1425, %v1424
    %v1430 = vunpack.c.l.b16 %v1426
    %v1431 = vunpack.c.h.b16 %v1426
    %v1432 = vunpack.c.l.b16 %v1427
    %v1433 = vunpack.c.h.b16 %v1427
    %v1434 = vpack.c.b16 %v1430, %v1430
    %v1435 = vpack.c.b16 %v1431, %v1431
    %v1436 = vpack.c.b16 %v1432, %v1432
    %v1437 = vpack.c.b16 %v1433, %v1433
    %1442 = vst [vmem:[#allocation16] sm:$0xf] %v1434
    %1443 = vst [vmem:[#allocation16 + $0x4] sm:$0xf] %v1435
    %1444 = vst [vmem:[#allocation16 + $0x8] sm:$0xf] %v1436
    %1445 = vst [vmem:[#allocation16 + $0xc] sm:$0xf] %v1437
    // Predicated region
    $region58: #{tpu_custom_call.1} parent=1 // pred_check
      _
    $region59: #{tpu_custom_call.1} parent=1 // pred_check_branch
      %1447 = sbr.rel (0) target = $region61
    $region60: #{tpu_custom_call.1} parent=1 // pred_region
      %s1449 = ssub.s32 256, 256
      %1450 = vsyncadd [#allocation6], %s1449
      %s1451 = sshll.u32 [#allocation16], 4
      %s1452 = int_to_ptr.vmem [resolvable:$true] %s1451
      %1457 = dma.vmem_to_hbm [thread:$0]  %s1452, 256, %s7, [#allocation6], 64, 64, 4
    $region61: #{tpu_custom_call.1} parent=1 // pred_fallthru
      _
    // Predicated region
    $region62: #{tpu_custom_call.1} parent=1 // pred_check
      _
    $region63: #{tpu_custom_call.1} parent=1 // pred_check_branch
      %1459 = sbr.rel (0) target = $region65
    $region64: #{tpu_custom_call.1} parent=1 // pred_region
      %1460 = dma.done [#allocation6], 256
    $region65: #{tpu_custom_call.1} parent=1 // pred_fallthru
      _
    %1461 = vsyncpa [#allocation5], 1
    %1462 = vsyncpa [#allocation8], 1
    %1463 = vsyncpa [#allocation11], 1
    %1464 = vsyncpa [#allocation14], 1
    %1465 = vsyncpa [#allocation6], 1

</llo_original>
